<compile_context>
chip_gen: v7x
topology: tpu7x:2x2x1
jax: 0.10.0
libtpu: 0.0.40
codegen_flags: <defaults>
</compile_context>

<pallas_src>
import functools

import jax
import jax.numpy as jnp
from jax.experimental import pallas as pl
from jax.experimental.pallas import tpu as pltpu

# ----------------------------------------------------------------------------
# Config (the `params` dict of the PyTorch module, made concrete & small)
# ----------------------------------------------------------------------------
MAX_CAV = 2
RESOLUTION = 0.4          # sttf.resolution (discrete_ratio)
DOWNSAMPLE_RATE = 2       # sttf.downsample_rate
USE_ROI_MASK = False
TARGET = "dynamic"
SEG_HEAD_DIM = 32
OUTPUT_CLASS = 3
SEG_LANE_PAD = 128        # lane-dense seg-head output; wrapper slices [:OUTPUT_CLASS]
C_ENC1, C_ENC2, C_BEV = 32, 32, 32
K1_PAD = 32               # encoder conv1 contraction (3*3*3=27) padded to 32


def _tc_parallel_blocks(m: int, align: int = 8) -> int:
    """2 row-blocks only on v7x (dual TensorCore); 1 on v5e/v6e (single TC)."""
    try:
        kind = jax.devices()[0].device_kind.lower()
        want = 2 if "v7" in kind else 1
    except Exception:  # pragma: no cover
        want = 1
    return want if (want > 1 and m % (want * align) == 0) else 1


# ----------------------------------------------------------------------------
# Kernel 1: matmul + bias (+ReLU)  -- encoder conv1 as matmul (bf16 out)
# ----------------------------------------------------------------------------
def _matmul_bias_kernel(x_ref, w_ref, b_ref, o_ref, *, relu):
    acc = jnp.dot(x_ref[...], w_ref[...], preferred_element_type=jnp.float32)
    acc = acc + b_ref[...]
    if relu:
        acc = jnp.maximum(acc, 0.0)
    o_ref[...] = acc.astype(o_ref.dtype)


def pallas_matmul_bias(x, w, b, relu=False, out_dtype=jnp.float32):
    M, K = x.shape
    N = w.shape[1]
    nb = _tc_parallel_blocks(M)
    tm = M // nb
    return pl.pallas_call(
        functools.partial(_matmul_bias_kernel, relu=relu),
        out_shape=jax.ShapeDtypeStruct((M, N), out_dtype),
        grid=(nb,),
        in_specs=[
            pl.BlockSpec((tm, K), lambda i: (i, 0)),
            pl.BlockSpec((K, N), lambda i: (0, 0)),
            pl.BlockSpec((1, N), lambda i: (0, 0)),
        ],
        out_specs=pl.BlockSpec((tm, N), lambda i: (i, 0)),
        compiler_params=pltpu.CompilerParams(dimension_semantics=("parallel",)),
    )(x.astype(jnp.bfloat16), w.astype(jnp.bfloat16),
      b.reshape(1, N).astype(jnp.float32))


# ----------------------------------------------------------------------------
# Kernel 2: fused (conv2-as-matmul + ReLU) -> (vpm 1x1 + ReLU), bf16 out
# ----------------------------------------------------------------------------
def _matmul2_kernel(x_ref, w1_ref, b1_ref, w2_ref, b2_ref, o_ref):
    h = jnp.dot(x_ref[...], w1_ref[...], preferred_element_type=jnp.float32)
    h = jnp.maximum(h + b1_ref[...], 0.0)
    y = jnp.dot(h.astype(jnp.bfloat16), w2_ref[...],
                preferred_element_type=jnp.float32)
    o_ref[...] = jnp.maximum(y + b2_ref[...], 0.0).astype(o_ref.dtype)


def pallas_fused_conv_vpm(patches, w1, b1, w2, b2, out_dtype=jnp.bfloat16):
    M, K = patches.shape
    N1, N2 = w1.shape[1], w2.shape[1]
    nb = _tc_parallel_blocks(M)
    tm = M // nb
    return pl.pallas_call(
        _matmul2_kernel,
        out_shape=jax.ShapeDtypeStruct((M, N2), out_dtype),
        grid=(nb,),
        in_specs=[
            pl.BlockSpec((tm, K), lambda i: (i, 0)),
            pl.BlockSpec((K, N1), lambda i: (0, 0)),
            pl.BlockSpec((1, N1), lambda i: (0, 0)),
            pl.BlockSpec((N1, N2), lambda i: (0, 0)),
            pl.BlockSpec((1, N2), lambda i: (0, 0)),
        ],
        out_specs=pl.BlockSpec((tm, N2), lambda i: (i, 0)),
        compiler_params=pltpu.CompilerParams(dimension_semantics=("parallel",)),
    )(patches.astype(jnp.bfloat16), w1.astype(jnp.bfloat16),
      b1.reshape(1, N1).astype(jnp.float32), w2.astype(jnp.bfloat16),
      b2.reshape(1, N2).astype(jnp.float32))


# ----------------------------------------------------------------------------
# Kernel 3: bilinear warp combine + masked cross-CAV attention (fused)
#   block layout: (1, L, P, 4*C) -> per-CAV slabs are full 128-lane rows.
#   G arrives bf16 and is widened to f32 on the VPU.
# ----------------------------------------------------------------------------
def _warp_fuse_kernel(g_ref, wt_ref, bias_ref, aw_ref, o_ref, *, L, C):
    aw = aw_ref[...]                        # (1, C) f32 attention weights
    bias = bias_ref[0]                      # (1, L) f32 : 0 valid / -1e9 padded CAV

    feats, logits = [], []
    for l in range(L):
        g = g_ref[0, l].astype(jnp.float32)     # (P, 4*C)
        wt = wt_ref[0, l]                       # (P, 4)
        xl = (wt[:, 0:1] * g[:, 0:C]
              + wt[:, 1:2] * g[:, C:2 * C]
              + wt[:, 2:3] * g[:, 2 * C:3 * C]
              + wt[:, 3:4] * g[:, 3 * C:4 * C])             # (P, C) bilinear combine
        feats.append(xl)
        lg = jnp.sum(xl * aw, axis=-1, keepdims=True) + bias[:, l:l + 1]
        logits.append(lg)                                   # (P, 1)

    mx = logits[0]
    for l in range(1, L):
        mx = jnp.maximum(mx, logits[l])
    exps = [jnp.exp(lg - mx) for lg in logits]
    den = exps[0]
    for l in range(1, L):
        den = den + exps[l]
    # approx reciprocal on the EUP; ~1e-3 relative deviation vs. exact softmax.
    inv = pl.reciprocal(den, approx=True)

    out = (exps[0] * inv) * feats[0]
    for l in range(1, L):
        out = out + (exps[l] * inv) * feats[l]
    o_ref[0] = out


def pallas_warp_fuse(G, Wt, bias, attn_w, L, C):
    B, _, P, _ = G.shape
    return pl.pallas_call(
        functools.partial(_warp_fuse_kernel, L=L, C=C),
        out_shape=jax.ShapeDtypeStruct((B, P, C), jnp.float32),
        grid=(B,),
        in_specs=[
            pl.BlockSpec((1, L, P, 4 * C), lambda b: (b, 0, 0, 0)),
            pl.BlockSpec((1, L, P, 4), lambda b: (b, 0, 0, 0)),
            pl.BlockSpec((1, 1, L), lambda b: (b, 0, 0)),
            pl.BlockSpec((1, C), lambda b: (0, 0)),
        ],
        out_specs=pl.BlockSpec((1, P, C), lambda b: (b, 0, 0)),
        compiler_params=pltpu.CompilerParams(dimension_semantics=("parallel",)),
    )(G.astype(jnp.bfloat16), Wt.astype(jnp.float32),
      bias.astype(jnp.float32), attn_w.astype(jnp.float32))


# ----------------------------------------------------------------------------
# Kernel 4: fused [2x nearest upsample -> 3x3 decoder conv -> ReLU ->
#                  3x3 seg-head conv] per image, phase-decomposed.
#
#   Output row (ph*P + p) with ph = 2*pi + pj, p = m*w + n corresponds to
#   high-res pixel (2m+pi, 2n+pj).  Both convs build all 9 taps into one
#   (4P, 9*C) slab and issue a single K=9*C MXU dot.  Seg output is padded
#   to 128 lanes (unmasked stores); wrapper slices the first OUTPUT_CLASS.
# ----------------------------------------------------------------------------
_OFFS = tuple((di, dj) for di in (-1, 0, 1) for dj in (-1, 0, 1))
_PHASES = ((0, 0), (0, 1), (1, 0), (1, 1))


def _dec_seg_kernel(x_ref, dw_ref, db_ref, sw_ref, sb_ref, o_ref, *, h, w):
    P = h * w
    x = x_ref[0]                                         # (P, Cin) f32, low-res

    idx = jax.lax.broadcasted_iota(jnp.int32, (P, 1), 0)
    m = idx // w
    n = idx % w
    # high-res validity depends only on a = pi+di, b = pj+dj in {-1,0,1,2};
    # build the 2 nontrivial row masks and 2 col masks ONCE, reuse for both convs.
    row_ok = {-1: m >= 1, 0: None, 1: None, 2: m <= h - 2}
    col_ok = {-1: n >= 1, 0: None, 1: None, 2: n <= w - 2}

    def mask_of(a, b):
        rm, cm = row_ok[a], col_ok[b]
        if rm is None:
            return cm
        if cm is None:
            return rm
        return rm & cm

    def shifted(src, dm, dn):
        s = (-(dm * w + dn)) % P
        return pltpu.roll(src, s, axis=0) if s else src

    def conv_taps(src_of_phase):
        """Build the (4P, 9*C) tap matrix; src_of_phase(a, b) -> (P, C) source."""
        rows = []
        for (pi, pj) in _PHASES:
            taps = []
            for (di, dj) in _OFFS:
                a, b = pi + di, pj + dj
                tap = shifted(src_of_phase(a, b), a // 2, b // 2)
                msk = mask_of(a, b)
                if msk is not None:
                    tap = jnp.where(msk, tap, 0.0)
                taps.append(tap)
            rows.append(jnp.concatenate(taps, axis=1))   # (P, 9*C)
        return jnp.concatenate(rows, axis=0)             # (4P, 9*C)

    # ---- decoder conv (taps read the shared low-res input) + ReLU ----------
    dec_in = conv_taps(lambda a, b: x)
    h1 = jnp.dot(dec_in.astype(jnp.bfloat16), dw_ref[...],
                 preferred_element_type=jnp.float32)
    h1 = jnp.maximum(h1 + db_ref[...], 0.0)              # (4P, Cmid) f32

    # ---- seg-head conv (taps read the phase slab of h1) --------------------
    def h1_slab(a, b):
        q = 2 * (a % 2) + (b % 2)
        return h1[q * P:(q + 1) * P, :]

    seg_in = conv_taps(h1_slab)
    y = jnp.dot(seg_in.astype(jnp.bfloat16), sw_ref[...],
                preferred_element_type=jnp.float32)
    o_ref[0] = y + sb_ref[...]                           # lane-dense 128-wide store


def pallas_decoder_seg(x, dec_w, dec_b, seg_w, seg_b, h, w):
    # TODO(synk): for large BEV grids strip-mine over row bands with a 1-row
    # halo so the per-step VMEM footprint fits v7x's 64 MiB.
    B, P, Cin = x.shape
    Cmid = dec_w.shape[1]
    Nout = seg_w.shape[1]
    return pl.pallas_call(
        functools.partial(_dec_seg_kernel, h=h, w=w),
        out_shape=jax.ShapeDtypeStruct((B, 4 * P, Nout), jnp.float32),
        grid=(B,),
        in_specs=[
            pl.BlockSpec((1, P, Cin), lambda b: (b, 0, 0)),
            pl.BlockSpec((9 * Cin, Cmid), lambda b: (0, 0)),
            pl.BlockSpec((1, Cmid), lambda b: (0, 0)),
            pl.BlockSpec((9 * Cmid, Nout), lambda b: (0, 0)),
            pl.BlockSpec((1, Nout), lambda b: (0, 0)),
        ],
        out_specs=pl.BlockSpec((1, 4 * P, Nout), lambda b: (b, 0, 0)),
        compiler_params=pltpu.CompilerParams(
            dimension_semantics=("parallel",),
            vmem_limit_bytes=32 * 1024 * 1024),
    )(x.astype(jnp.float32), dec_w.astype(jnp.bfloat16),
      dec_b.reshape(1, Cmid).astype(jnp.float32), seg_w.astype(jnp.bfloat16),
      seg_b.reshape(1, Nout).astype(jnp.float32))


# ----------------------------------------------------------------------------
# Wrapper-side helpers
# ----------------------------------------------------------------------------
def _im2col3x3(x_nhwc, stride, pad, pad_k_to=None):
    # TODO(synk): stride-2 im2col stays wrapper-side (XLA); strided in-kernel
    # taps along the sublane axis have no robust Pallas lowering.
    x = jnp.pad(x_nhwc, ((0, 0), (pad, pad), (pad, pad), (0, 0)))
    N, Hp, Wp, C = x.shape
    oh = (Hp - 3) // stride + 1
    ow = (Wp - 3) // stride + 1
    cols = [x[:, di:di + stride * oh:stride, dj:dj + stride * ow:stride, :]
            for di in range(3) for dj in range(3)]
    out = jnp.concatenate(cols, axis=-1)               # (N, oh, ow, 9*C)
    if pad_k_to is not None and pad_k_to > out.shape[-1]:
        out = jnp.pad(out, ((0, 0), (0, 0), (0, 0), (0, pad_k_to - out.shape[-1])))
    return out


# ---- STTF math (exact per the PyTorch reference) ----------------------------
def get_discretized_transformation_matrix(matrix, discrete_ratio, downsample_rate):
    m = matrix[:, :, 0:2, :]
    m = jnp.stack([m[..., 0], m[..., 1], m[..., 3]], axis=-1)
    m = m.at[..., -1].set(m[..., -1] / (discrete_ratio * downsample_rate))
    return m.astype(jnp.float32)


def get_rotation_matrix2d(M, dsize):
    H, W = dsize
    B = M.shape[0]
    center = jnp.array([W / 2.0, H / 2.0], dtype=jnp.float32)
    eye = jnp.tile(jnp.eye(3, dtype=jnp.float32)[None], (B, 1, 1))
    shift_m = eye.at[:, :2, 2].set(center)
    shift_m_inv = eye.at[:, :2, 2].set(-center)
    rotat_m = eye.at[:, :2, :2].set(M[:, :2, :2])
    affine_m = shift_m @ rotat_m @ shift_m_inv
    return affine_m[:, :2, :]


def get_transformation_matrix(M, dsize):
    T = get_rotation_matrix2d(M, dsize)
    T = T.at[..., 2].add(M[..., 2])
    return T


def _normal_transform_pixel(H, W):
    return jnp.array(
        [[2.0 / (W - 1), 0.0, -1.0],
         [0.0, 2.0 / (H - 1), -1.0],
         [0.0, 0.0, 1.0]], dtype=jnp.float32)


def _bilinear_gather_orig(src_flat, ix, iy, H0, W0):
    """4-corner bilinear gather (zeros padding) directly from the ORIGINAL
    (H0, W0) channels-last flattening -- the STTF transpose/flip is folded
    into the index formula.  src_flat: (N, H0*W0, C) bf16; ix/iy: (N, P) f32.
    Returns corners (N, P, 4, C) bf16 and weights (N, P, 4) f32."""
    N, _, C = src_flat.shape
    ix0 = jnp.floor(ix)
    iy0 = jnp.floor(iy)
    wx1 = ix - ix0
    wx0 = 1.0 - wx1
    wy1 = iy - iy0
    wy0 = 1.0 - wy1
    corners = ((ix0, iy0, wx0 * wy0), (ix0 + 1.0, iy0, wx1 * wy0),
               (ix0, iy0 + 1.0, wx0 * wy1), (ix0 + 1.0, iy0 + 1.0, wx1 * wy1))
    gs, ws = [], []
    for cx, cy, wgt in corners:
        valid = ((cx >= 0) & (cx <= H0 - 1)
                 & (cy >= 0) & (cy <= W0 - 1)).astype(jnp.float32)
        cxc = jnp.clip(cx, 0, H0 - 1).astype(jnp.int32)
        cyc = jnp.clip(cy, 0, W0 - 1).astype(jnp.int32)
        # source[row=cy, col=cx] of the swapped/flipped image == x_orig[H0-1-cx, cy]
        idx = (H0 - 1 - cxc) * W0 + cyc                                  # (N, P)
        # TODO(synk): the data-dependent spatial gather stays in XLA; Pallas TPU
        # has no clean per-row dynamic gather at these shapes.
        g = jnp.take_along_axis(
            src_flat, jnp.broadcast_to(idx[:, :, None], idx.shape + (C,)), axis=1)
        gs.append(g)
        ws.append(wgt * valid)
    return jnp.stack(gs, axis=2), jnp.stack(ws, axis=2)


def sttf_fuse(x, spatial_correction_matrix, mask, attn_w,
              resolution, downsample_rate):
    """STTF (exact warp math of the reference) + masked cross-CAV attention
    fusion.  x: (B, L, H0, W0, C) bf16 channels-last -> fused (B, H0*W0, C)
    f32 already in the final (h, w) row-major pixel order (the pre/post
    transpose+flip of the reference STTF is folded into the grid/index math)."""
    B, L, H0, W0, C = x.shape
    N, P = B * L, H0 * W0

    dist = get_discretized_transformation_matrix(
        spatial_correction_matrix, resolution, downsample_rate)           # (B,L,2,3)
    Hs, Ws = W0, H0                                                       # swapped dims
    T = get_transformation_matrix(dist.reshape(-1, 2, 3), (Hs, Ws))       # (N,2,3)
    bottom = jnp.tile(jnp.array([[[0.0, 0.0, 1.0]]], jnp.float32), (N, 1, 1))
    M33 = jnp.concatenate([T, bottom], axis=1)
    norm = _normal_transform_pixel(Hs, Ws)
    # align_corners=True normalization (matches the reference warp_affine path)
    theta = jnp.linalg.inv(norm @ M33 @ jnp.linalg.inv(norm))[:, :2, :]

    # Target grid enumerated directly in final (h, w) order:
    #   warp target row i_t = w, col j_t = H0-1-h.
    gh, gw = jnp.meshgrid(jnp.arange(H0, dtype=jnp.float32),
                          jnp.arange(W0, dtype=jnp.float32), indexing="ij")
    gx = 1.0 - 2.0 * gh / (H0 - 1)          # normalized j_t over Ws = H0
    gy = -1.0 + 2.0 * gw / (W0 - 1)         # normalized i_t over Hs = W0
    base = jnp.stack([gx, gy, jnp.ones_like(gx)], axis=-1).reshape(P, 3)
    grid = jnp.einsum("nij,pj->npi", theta, base)                         # (N,P,2)
    ix = (grid[..., 0] + 1.0) * 0.5 * (Ws - 1)      # source col (range [0, H0-1])
    iy = (grid[..., 1] + 1.0) * 0.5 * (Hs - 1)      # source row (range [0, W0-1])

    src_flat = x.reshape(N, P, C)                   # bf16, no transpose/flip needed
    G, Wt = _bilinear_gather_orig(src_flat, ix, iy, H0, W0)
    G = G.reshape(B, L, P, 4 * C)                   # pure reshape (no transpose)
    Wt = Wt.reshape(B, L, P, 4)
    bias = ((1.0 - mask) * (-1e9)).reshape(B, 1, L).astype(jnp.float32)

    return pallas_warp_fuse(G, Wt, bias, attn_w, L=L, C=C)                # (B,P,C)


# ----------------------------------------------------------------------------
# regroup (shapes are static: record_len is a python list)
# ----------------------------------------------------------------------------
def regroup(x, record_len, max_cav):
    feats, masks = [], []
    idx = 0
    for cnt in record_len:
        assert 1 <= cnt <= max_cav, "every sample must contain at least the ego CAV"
        f = x[idx:idx + cnt]
        pad = max_cav - cnt
        if pad > 0:
            f = jnp.concatenate([f, jnp.zeros((pad,) + f.shape[1:], f.dtype)], axis=0)
        feats.append(f)
        masks.append(jnp.array([1.0] * cnt + [0.0] * pad, dtype=jnp.float32))
        idx += cnt
    return jnp.stack(feats, axis=0), jnp.stack(masks, axis=0)


# ----------------------------------------------------------------------------
# Parameters (deterministic, in-script)
# ----------------------------------------------------------------------------
def init_params(key):
    ks = jax.random.split(key, 8)

    def w(k, shape, scale=0.05):
        return scale * jax.random.normal(k, shape, dtype=jnp.float32)

    enc_w1 = jnp.pad(w(ks[0], (27, C_ENC1)), ((0, K1_PAD - 27), (0, 0)))  # K 27->32
    return {
        "enc_w1": enc_w1,
        "enc_b1": jnp.zeros((C_ENC1,), jnp.float32),
        "enc_w2": w(ks[1], (9 * C_ENC1, C_ENC2)),
        "enc_b2": jnp.zeros((C_ENC2,), jnp.float32),
        "vpm_w": w(ks[2], (C_ENC2, C_BEV)),
        "vpm_b": jnp.zeros((C_BEV,), jnp.float32),
        "fuse_w": w(ks[3], (1, C_BEV), 0.1),
        "dec_w": w(ks[4], (3 * 3 * C_BEV, SEG_HEAD_DIM)),
        "dec_b": jnp.zeros((SEG_HEAD_DIM,), jnp.float32),
        "seg_w": w(ks[5], (3 * 3 * SEG_HEAD_DIM, OUTPUT_CLASS)),
        "seg_b": jnp.zeros((OUTPUT_CLASS,), jnp.float32),
    }


# ----------------------------------------------------------------------------
# ViewParseNetworkSwapFuse.forward
# ----------------------------------------------------------------------------
def forward(params, batch_dict):
    x = batch_dict["inputs"]                       # (N_total, 3, Hin, Win), NCHW
    tmat = batch_dict["transformation_matrix"]     # (B, max_cav, 4, 4)
    record_len = batch_dict["record_len"]          # python list, sum == N_total

    # ---- encoder (ResnetEncoder stand-in): two stride-2 3x3 convs + ReLU ----
    # TODO(synk): torchvision ResNet backbone not provided; simplified encoder.
    x = jnp.transpose(x, (0, 2, 3, 1)).astype(jnp.bfloat16)   # NCHW -> NHWC, bf16
    p1 = _im2col3x3(x, stride=2, pad=1, pad_k_to=K1_PAD)
    n, oh1, ow1, k1 = p1.shape
    x = pallas_matmul_bias(p1.reshape(n * oh1 * ow1, k1),
                           params["enc_w1"], params["enc_b1"],
                           relu=True, out_dtype=jnp.bfloat16
                           ).reshape(n, oh1, ow1, C_ENC1)

    # ---- encoder conv2 + vpm (ViewTransferModule stand-in): fused kernel ----
    # TODO(synk): ViewTransferModule body not provided; per-pixel linear to BEV.
    p2 = _im2col3x3(x, stride=2, pad=1)
    n, oh2, ow2, k2 = p2.shape
    x = pallas_fused_conv_vpm(p2.reshape(n * oh2 * ow2, k2),
                              params["enc_w2"], params["enc_b2"],
                              params["vpm_w"], params["vpm_b"]
                              ).reshape(n, oh2, ow2, C_BEV)    # bf16, channels-last
    # (vpm emits (N,1,C,H,W) in the reference; the squeeze(1) is a no-op here)

    # ---- regroup ----
    x, mask = regroup(x, record_len, MAX_CAV)      # (B, L, H0, W0, C), (B, L)
    B, L, H0, W0, C = x.shape

    # ---- STTF (exact warp math) + fusion (SwapFusionEncoder stand-in) ----
    # TODO(synk): CoBEVT window/grid swap-attention not provided; replaced by a
    # masked per-pixel attention across CAVs, fused with the bilinear combine.
    # com_mask path: use_roi_mask == False -> plain record-length mask.
    fused = sttf_fuse(x, tmat, mask, params["fuse_w"],
                      RESOLUTION, DOWNSAMPLE_RATE)             # (B, H0*W0, C) f32

    # ---- decoder (NaiveDecoder stand-in) + seg head: one fused kernel ----
    # TODO(synk): ConvTranspose2d replaced by resize-conv; the 2x nearest
    # upsample is folded into the kernel via phase decomposition.
    seg_w_p = jnp.zeros((9 * SEG_HEAD_DIM, SEG_LANE_PAD), jnp.float32
                        ).at[:, :OUTPUT_CLASS].set(params["seg_w"])
    seg_b_p = jnp.zeros((SEG_LANE_PAD,), jnp.float32
                        ).at[:OUTPUT_CLASS].set(params["seg_b"])
    out = pallas_decoder_seg(fused, params["dec_w"], params["dec_b"],
                             seg_w_p, seg_b_p, H0, W0)         # (B, 4*P, 128)

    Hd, Wd = 2 * H0, 2 * W0
    out = out.reshape(B, 2, 2, H0, W0, SEG_LANE_PAD)
    out = jnp.transpose(out, (0, 3, 1, 4, 2, 5)).reshape(B, Hd, Wd, SEG_LANE_PAD)
    logits = out[..., :OUTPUT_CLASS]                           # (B, Hd, Wd, ncls)

    dynamic_map = jnp.transpose(logits, (0, 3, 1, 2))[:, None]  # (B,1,ncls,Hd,Wd)
    static_map = jnp.zeros_like(dynamic_map)                    # target == 'dynamic'
    return {"static_seg": static_map, "dynamic_seg": dynamic_map}


# ----------------------------------------------------------------------------
# Main
# ----------------------------------------------------------------------------
if __name__ == "__main__":
    key = jax.random.PRNGKey(0)
    k_in, _ = jax.random.split(key)

    # total CAVs = 3 split over 2 ego samples; camera-ish input 3x32x32 (NCHW)
    record_len = [2, 1]
    inputs = jax.random.normal(k_in, (3, 3, 32, 32), dtype=jnp.float32)

    # transformation matrices to ego: identity + a small translation for CAV 1
    tmat = jnp.tile(jnp.eye(4, dtype=jnp.float32)[None, None], (2, MAX_CAV, 1, 1))
    tmat = tmat.at[0, 1, 0, 3].set(0.8)   # 0.8 m -> 1 BEV pixel after discretization

    params = init_params(jax.random.PRNGKey(42))

    batch_dict = {"inputs": inputs,
                  "transformation_matrix": tmat,
                  "record_len": record_len}

    out = forward(params, batch_dict)
    out = jax.block_until_ready(out)

    assert out["dynamic_seg"].shape == (2, 1, OUTPUT_CLASS, 16, 16)
    assert out["static_seg"].shape == (2, 1, OUTPUT_CLASS, 16, 16)
    assert bool(jnp.isfinite(out["dynamic_seg"]).all())
    print("KERNEL_OK")
</pallas_src>

<mosaic_0001>
module attributes {stable_mosaic.version = 11 : i64} {
  func.func @_matmul_bias_kernel(%arg0: i32, %arg1: memref<768x32xbf16, #tpu.memory_space<vmem>>, %arg2: memref<32x32xbf16, #tpu.memory_space<vmem>>, %arg3: memref<1x32xf32, #tpu.memory_space<vmem>>, %arg4: memref<768x32xbf16, #tpu.memory_space<vmem>>) attributes {dimension_semantics = [#tpu.dimension_semantics<parallel>], iteration_bounds = array<i64: 1>, scalar_prefetch = 0 : i64, scratch_operands = 0 : i64, tpu.core_type = #tpu.core_type<tc>, window_params = [{transform_indices = @transform_0, window_bounds = array<i64: 768, 32>}, {pipeline_mode = #tpu.pipeline_mode<synchronous>, transform_indices = @transform_1, window_bounds = array<i64: 32, 32>}, {pipeline_mode = #tpu.pipeline_mode<synchronous>, transform_indices = @transform_2, window_bounds = array<i64: 1, 32>}, {transform_indices = @transform_3, window_bounds = array<i64: 768, 32>}]} {
    %c0 = arith.constant 0 : index
    %c0_0 = arith.constant 0 : index
    %0 = vector.load %arg1[%c0, %c0_0] : memref<768x32xbf16, #tpu.memory_space<vmem>>, vector<768x32xbf16>
    %c0_1 = arith.constant 0 : index
    %c0_2 = arith.constant 0 : index
    %1 = vector.load %arg2[%c0_1, %c0_2] : memref<32x32xbf16, #tpu.memory_space<vmem>>, vector<32x32xbf16>
    %cst = arith.constant dense<0.000000e+00> : vector<768x32xf32>
    %2 = tpu.matmul %0, %1, %cst {dimension_numbers = #tpu.dot_dimension_numbers<[1], [0], [0], [1], [0, 0, 1, 1], [], []>} : vector<768x32xbf16>, vector<32x32xbf16>, vector<768x32xf32> -> vector<768x32xf32>
    %c0_3 = arith.constant 0 : index
    %c0_4 = arith.constant 0 : index
    %3 = vector.load %arg3[%c0_3, %c0_4] : memref<1x32xf32, #tpu.memory_space<vmem>>, vector<1x32xf32>
    %4 = vector.broadcast %3 : vector<1x32xf32> to vector<768x32xf32>
    %5 = arith.addf %2, %4 : vector<768x32xf32>
    %cst_5 = arith.constant 0.000000e+00 : f32
    %6 = vector.broadcast %cst_5 : f32 to vector<768x32xf32>
    %7 = arith.maximumf %5, %6 : vector<768x32xf32>
    %8 = arith.truncf %7 : vector<768x32xf32> to vector<768x32xbf16>
    %c0_6 = arith.constant 0 : index
    %c0_7 = arith.constant 0 : index
    %9 = vector.load %arg4[%c0_6, %c0_7] : memref<768x32xbf16, #tpu.memory_space<vmem>>, vector<768x32xbf16>
    tpu.vector_store %arg4[%c0_6, %c0_7], %8 {strides = array<i32>} : memref<768x32xbf16, #tpu.memory_space<vmem>>, vector<768x32xbf16>,
    return
  }
  func.func @transform_0(%arg0: i32) -> (i32, i32) {
    %c0_i32 = arith.constant 0 : i32
    %c0_i32_0 = arith.constant 0 : i32
    return %arg0, %c0_i32 : i32, i32
  }
  func.func @transform_1(%arg0: i32) -> (i32, i32) {
    %c0_i32 = arith.constant 0 : i32
    %c0_i32_0 = arith.constant 0 : i32
    %c0_i32_1 = arith.constant 0 : i32
    return %c0_i32, %c0_i32_0 : i32, i32
  }
  func.func @transform_2(%arg0: i32) -> (i32, i32) {
    %c0_i32 = arith.constant 0 : i32
    %c0_i32_0 = arith.constant 0 : i32
    %c0_i32_1 = arith.constant 0 : i32
    return %c0_i32, %c0_i32_0 : i32, i32
  }
  func.func @transform_3(%arg0: i32) -> (i32, i32) {
    %c0_i32 = arith.constant 0 : i32
    %c0_i32_0 = arith.constant 0 : i32
    return %arg0, %c0_i32 : i32, i32
  }
}

</mosaic_0001>

<llo_original>
// kernel: tpu_custom_call.1
$region0: #{tpu_custom_call.1}
  #allocation0 [shape = 'u32[]', space=smem, size = 0x4, offset = 0x4, fixed_abs, tag = 'smem constant byte address 0x4 - core index']
  #allocation1 [shape = 'u32[144,128]{1,0:T(1,128)}', space=vmem, size = 0x12000, scoped, tag = 'internal scratch']
  %s0 = inlined_call_operand.vmem [shape: bf16[768,32], index: 0, kind: input, shape index: {}]
  %s1 = inlined_call_operand.vmem [shape: bf16[32,32], index: 1, kind: input, shape index: {}]
  %s2 = inlined_call_operand.vmem [shape: f32[1,32], index: 2, kind: input, shape index: {}]
  %s3 = inlined_call_operand.vmem [shape: bf16[768,32], index: 3, kind: output, shape index: {}]
  %s4 = sld [smem:[#allocation0]]
  $region22: #{tpu_custom_call.1} parent=0
    _
  %s6 = ssub.s32 1, %s4
  %s7 = scalar_select 0, %s6, %s4
  // Predicated region
  $region2: #{tpu_custom_call.1} parent=0 // pred_check
    _
  $region3: #{tpu_custom_call.1} parent=0 // pred_check_branch
    %9 = sbr.rel (0) target = $region5
  $region4: #{tpu_custom_call.1} parent=0 // pred_region
    _
  $region5: #{tpu_custom_call.1} parent=0 // pred_fallthru
    _
  // Predicated region
  $region6: #{tpu_custom_call.1} parent=0 // pred_check
    _
  $region7: #{tpu_custom_call.1} parent=0 // pred_check_branch
    %11 = sbr.rel (0) target = $region9
  $region8: #{tpu_custom_call.1} parent=0 // pred_region
    _
  $region9: #{tpu_custom_call.1} parent=0 // pred_fallthru
    _
  // Predicated region
  $region10: #{tpu_custom_call.1} parent=0 // pred_check
    _
  $region11: #{tpu_custom_call.1} parent=0 // pred_check_branch
    %13 = sbr.rel (0) target = $region13
  $region12: #{tpu_custom_call.1} parent=0 // pred_region
    _
  $region13: #{tpu_custom_call.1} parent=0 // pred_fallthru
    _
  %v15 = vld [vmem:[%s0] sm:$0xf]
  %v16 = vld [vmem:[%s0 + $0x4] sm:$0xf]
  %v17 = vld [vmem:[%s0 + $0x8] sm:$0xf]
  %v18 = vld [vmem:[%s0 + $0xc] sm:$0xf]
  %v19 = vld [vmem:[%s0 + $0x10] sm:$0xf]
  %v20 = vld [vmem:[%s0 + $0x14] sm:$0xf]
  %v21 = vld [vmem:[%s0 + $0x18] sm:$0xf]
  %v22 = vld [vmem:[%s0 + $0x1c] sm:$0xf]
  %v23 = vld [vmem:[%s0 + $0x20] sm:$0xf]
  %v24 = vld [vmem:[%s0 + $0x24] sm:$0xf]
  %v25 = vld [vmem:[%s0 + $0x28] sm:$0xf]
  %v26 = vld [vmem:[%s0 + $0x2c] sm:$0xf]
  %v27 = vld [vmem:[%s0 + $0x30] sm:$0xf]
  %v28 = vld [vmem:[%s0 + $0x34] sm:$0xf]
  %v29 = vld [vmem:[%s0 + $0x38] sm:$0xf]
  %v30 = vld [vmem:[%s0 + $0x3c] sm:$0xf]
  %v31 = vld [vmem:[%s0 + $0x40] sm:$0xf]
  %v32 = vld [vmem:[%s0 + $0x44] sm:$0xf]
  %v33 = vld [vmem:[%s0 + $0x48] sm:$0xf]
  %v34 = vld [vmem:[%s0 + $0x4c] sm:$0xf]
  %v35 = vld [vmem:[%s0 + $0x50] sm:$0xf]
  %v36 = vld [vmem:[%s0 + $0x54] sm:$0xf]
  %v37 = vld [vmem:[%s0 + $0x58] sm:$0xf]
  %v38 = vld [vmem:[%s0 + $0x5c] sm:$0xf]
  %v39 = vld [vmem:[%s0 + $0x60] sm:$0xf]
  %v40 = vld [vmem:[%s0 + $0x64] sm:$0xf]
  %v41 = vld [vmem:[%s0 + $0x68] sm:$0xf]
  %v42 = vld [vmem:[%s0 + $0x6c] sm:$0xf]
  %v43 = vld [vmem:[%s0 + $0x70] sm:$0xf]
  %v44 = vld [vmem:[%s0 + $0x74] sm:$0xf]
  %v45 = vld [vmem:[%s0 + $0x78] sm:$0xf]
  %v46 = vld [vmem:[%s0 + $0x7c] sm:$0xf]
  %v47 = vld [vmem:[%s0 + $0x80] sm:$0xf]
  %v48 = vld [vmem:[%s0 + $0x84] sm:$0xf]
  %v49 = vld [vmem:[%s0 + $0x88] sm:$0xf]
  %v50 = vld [vmem:[%s0 + $0x8c] sm:$0xf]
  %v51 = vld [vmem:[%s0 + $0x90] sm:$0xf]
  %v52 = vld [vmem:[%s0 + $0x94] sm:$0xf]
  %v53 = vld [vmem:[%s0 + $0x98] sm:$0xf]
  %v54 = vld [vmem:[%s0 + $0x9c] sm:$0xf]
  %v55 = vld [vmem:[%s0 + $0xa0] sm:$0xf]
  %v56 = vld [vmem:[%s0 + $0xa4] sm:$0xf]
  %v57 = vld [vmem:[%s0 + $0xa8] sm:$0xf]
  %v58 = vld [vmem:[%s0 + $0xac] sm:$0xf]
  %v59 = vld [vmem:[%s0 + $0xb0] sm:$0xf]
  %v60 = vld [vmem:[%s0 + $0xb4] sm:$0xf]
  %v61 = vld [vmem:[%s0 + $0xb8] sm:$0xf]
  %v62 = vld [vmem:[%s0 + $0xbc] sm:$0xf]
  %v63 = vld [vmem:[%s0 + $0xc0] sm:$0xf]
  %v64 = vld [vmem:[%s0 + $0xc4] sm:$0xf]
  %v65 = vld [vmem:[%s0 + $0xc8] sm:$0xf]
  %v66 = vld [vmem:[%s0 + $0xcc] sm:$0xf]
  %v67 = vld [vmem:[%s0 + $0xd0] sm:$0xf]
  %v68 = vld [vmem:[%s0 + $0xd4] sm:$0xf]
  %v69 = vld [vmem:[%s0 + $0xd8] sm:$0xf]
  %v70 = vld [vmem:[%s0 + $0xdc] sm:$0xf]
  %v71 = vld [vmem:[%s0 + $0xe0] sm:$0xf]
  %v72 = vld [vmem:[%s0 + $0xe4] sm:$0xf]
  %v73 = vld [vmem:[%s0 + $0xe8] sm:$0xf]
  %v74 = vld [vmem:[%s0 + $0xec] sm:$0xf]
  %v75 = vld [vmem:[%s0 + $0xf0] sm:$0xf]
  %v76 = vld [vmem:[%s0 + $0xf4] sm:$0xf]
  %v77 = vld [vmem:[%s0 + $0xf8] sm:$0xf]
  %v78 = vld [vmem:[%s0 + $0xfc] sm:$0xf]
  %v79 = vld [vmem:[%s0 + $0x100] sm:$0xf]
  %v80 = vld [vmem:[%s0 + $0x104] sm:$0xf]
  %v81 = vld [vmem:[%s0 + $0x108] sm:$0xf]
  %v82 = vld [vmem:[%s0 + $0x10c] sm:$0xf]
  %v83 = vld [vmem:[%s0 + $0x110] sm:$0xf]
  %v84 = vld [vmem:[%s0 + $0x114] sm:$0xf]
  %v85 = vld [vmem:[%s0 + $0x118] sm:$0xf]
  %v86 = vld [vmem:[%s0 + $0x11c] sm:$0xf]
  %v87 = vld [vmem:[%s0 + $0x120] sm:$0xf]
  %v88 = vld [vmem:[%s0 + $0x124] sm:$0xf]
  %v89 = vld [vmem:[%s0 + $0x128] sm:$0xf]
  %v90 = vld [vmem:[%s0 + $0x12c] sm:$0xf]
  %v91 = vld [vmem:[%s0 + $0x130] sm:$0xf]
  %v92 = vld [vmem:[%s0 + $0x134] sm:$0xf]
  %v93 = vld [vmem:[%s0 + $0x138] sm:$0xf]
  %v94 = vld [vmem:[%s0 + $0x13c] sm:$0xf]
  %v95 = vld [vmem:[%s0 + $0x140] sm:$0xf]
  %v96 = vld [vmem:[%s0 + $0x144] sm:$0xf]
  %v97 = vld [vmem:[%s0 + $0x148] sm:$0xf]
  %v98 = vld [vmem:[%s0 + $0x14c] sm:$0xf]
  %v99 = vld [vmem:[%s0 + $0x150] sm:$0xf]
  %v100 = vld [vmem:[%s0 + $0x154] sm:$0xf]
  %v101 = vld [vmem:[%s0 + $0x158] sm:$0xf]
  %v102 = vld [vmem:[%s0 + $0x15c] sm:$0xf]
  %v103 = vld [vmem:[%s0 + $0x160] sm:$0xf]
  %v104 = vld [vmem:[%s0 + $0x164] sm:$0xf]
  %v105 = vld [vmem:[%s0 + $0x168] sm:$0xf]
  %v106 = vld [vmem:[%s0 + $0x16c] sm:$0xf]
  %v107 = vld [vmem:[%s0 + $0x170] sm:$0xf]
  %v108 = vld [vmem:[%s0 + $0x174] sm:$0xf]
  %v109 = vld [vmem:[%s0 + $0x178] sm:$0xf]
  %v110 = vld [vmem:[%s0 + $0x17c] sm:$0xf]
  %v111 = vld [vmem:[%s1] sm:$0xf]
  %v112 = vld [vmem:[%s1 + $0x4] sm:$0xf]
  %v113 = vld [vmem:[%s1 + $0x8] sm:$0xf]
  %v114 = vld [vmem:[%s1 + $0xc] sm:$0xf]
  %v115 = vld [vmem:[%s2] sm:$0x1]
  %v117 = vlaneseq
  %v118 = vshrl.u32 %v117, 7
  %v119 = vsub.s32 0, %v118
  %v120 = vrot.slane %v115, %v119
  %v218 = vunpack.c.l.b16 %v15
  %v219 = vunpack.c.l.b16 %v16
  %v220 = vunpack.c.l.b16 %v17
  %v221 = vunpack.c.l.b16 %v18
  %v222 = vunpack.c.l.b16 %v19
  %v223 = vunpack.c.l.b16 %v20
  %v224 = vunpack.c.l.b16 %v21
  %v225 = vunpack.c.l.b16 %v22
  %v226 = vunpack.c.l.b16 %v23
  %v227 = vunpack.c.l.b16 %v24
  %v228 = vunpack.c.l.b16 %v25
  %v229 = vunpack.c.l.b16 %v26
  %v230 = vunpack.c.l.b16 %v27
  %v231 = vunpack.c.l.b16 %v28
  %v232 = vunpack.c.l.b16 %v29
  %v233 = vunpack.c.l.b16 %v30
  %v234 = vunpack.c.l.b16 %v31
  %v235 = vunpack.c.l.b16 %v32
  %v236 = vunpack.c.l.b16 %v33
  %v237 = vunpack.c.l.b16 %v34
  %v238 = vunpack.c.l.b16 %v35
  %v239 = vunpack.c.l.b16 %v36
  %v240 = vunpack.c.l.b16 %v37
  %v241 = vunpack.c.l.b16 %v38
  %v242 = vunpack.c.l.b16 %v39
  %v243 = vunpack.c.l.b16 %v40
  %v244 = vunpack.c.l.b16 %v41
  %v245 = vunpack.c.l.b16 %v42
  %v246 = vunpack.c.l.b16 %v43
  %v247 = vunpack.c.l.b16 %v44
  %v248 = vunpack.c.l.b16 %v45
  %v249 = vunpack.c.l.b16 %v46
  %v250 = vunpack.c.l.b16 %v47
  %v251 = vunpack.c.l.b16 %v48
  %v252 = vunpack.c.l.b16 %v49
  %v253 = vunpack.c.l.b16 %v50
  %v254 = vunpack.c.l.b16 %v51
  %v255 = vunpack.c.l.b16 %v52
  %v256 = vunpack.c.l.b16 %v53
  %v257 = vunpack.c.l.b16 %v54
  %v258 = vunpack.c.l.b16 %v55
  %v259 = vunpack.c.l.b16 %v56
  %v260 = vunpack.c.l.b16 %v57
  %v261 = vunpack.c.l.b16 %v58
  %v262 = vunpack.c.l.b16 %v59
  %v263 = vunpack.c.l.b16 %v60
  %v264 = vunpack.c.l.b16 %v61
  %v265 = vunpack.c.l.b16 %v62
  %v266 = vunpack.c.l.b16 %v63
  %v267 = vunpack.c.l.b16 %v64
  %v268 = vunpack.c.l.b16 %v65
  %v269 = vunpack.c.l.b16 %v66
  %v270 = vunpack.c.l.b16 %v67
  %v271 = vunpack.c.l.b16 %v68
  %v272 = vunpack.c.l.b16 %v69
  %v273 = vunpack.c.l.b16 %v70
  %v274 = vunpack.c.l.b16 %v71
  %v275 = vunpack.c.l.b16 %v72
  %v276 = vunpack.c.l.b16 %v73
  %v277 = vunpack.c.l.b16 %v74
  %v278 = vunpack.c.l.b16 %v75
  %v279 = vunpack.c.l.b16 %v76
  %v280 = vunpack.c.l.b16 %v77
  %v281 = vunpack.c.l.b16 %v78
  %v282 = vunpack.c.l.b16 %v79
  %v283 = vunpack.c.l.b16 %v80
  %v284 = vunpack.c.l.b16 %v81
  %v285 = vunpack.c.l.b16 %v82
  %v286 = vunpack.c.l.b16 %v83
  %v287 = vunpack.c.l.b16 %v84
  %v288 = vunpack.c.l.b16 %v85
  %v289 = vunpack.c.l.b16 %v86
  %v290 = vunpack.c.l.b16 %v87
  %v291 = vunpack.c.l.b16 %v88
  %v292 = vunpack.c.l.b16 %v89
  %v293 = vunpack.c.l.b16 %v90
  %v294 = vunpack.c.l.b16 %v91
  %v295 = vunpack.c.l.b16 %v92
  %v296 = vunpack.c.l.b16 %v93
  %v297 = vunpack.c.l.b16 %v94
  %v298 = vunpack.c.l.b16 %v95
  %v299 = vunpack.c.l.b16 %v96
  %v300 = vunpack.c.l.b16 %v97
  %v301 = vunpack.c.l.b16 %v98
  %v302 = vunpack.c.l.b16 %v99
  %v303 = vunpack.c.l.b16 %v100
  %v304 = vunpack.c.l.b16 %v101
  %v305 = vunpack.c.l.b16 %v102
  %v306 = vunpack.c.l.b16 %v103
  %v307 = vunpack.c.l.b16 %v104
  %v308 = vunpack.c.l.b16 %v105
  %v309 = vunpack.c.l.b16 %v106
  %v310 = vunpack.c.l.b16 %v107
  %v311 = vunpack.c.l.b16 %v108
  %v312 = vunpack.c.l.b16 %v109
  %v313 = vunpack.c.l.b16 %v110
  %v314 = vpack.c.b16 %v219, %v218
  %v315 = vpack.c.b16 %v221, %v220
  %v316 = vpack.c.b16 %v223, %v222
  %v317 = vpack.c.b16 %v225, %v224
  %v318 = vpack.c.b16 %v227, %v226
  %v319 = vpack.c.b16 %v229, %v228
  %v320 = vpack.c.b16 %v231, %v230
  %v321 = vpack.c.b16 %v233, %v232
  %v322 = vpack.c.b16 %v235, %v234
  %v323 = vpack.c.b16 %v237, %v236
  %v324 = vpack.c.b16 %v239, %v238
  %v325 = vpack.c.b16 %v241, %v240
  %v326 = vpack.c.b16 %v243, %v242
  %v327 = vpack.c.b16 %v245, %v244
  %v328 = vpack.c.b16 %v247, %v246
  %v329 = vpack.c.b16 %v249, %v248
  %v330 = vpack.c.b16 %v251, %v250
  %v331 = vpack.c.b16 %v253, %v252
  %v332 = vpack.c.b16 %v255, %v254
  %v333 = vpack.c.b16 %v257, %v256
  %v334 = vpack.c.b16 %v259, %v258
  %v335 = vpack.c.b16 %v261, %v260
  %v336 = vpack.c.b16 %v263, %v262
  %v337 = vpack.c.b16 %v265, %v264
  %v338 = vpack.c.b16 %v267, %v266
  %v339 = vpack.c.b16 %v269, %v268
  %v340 = vpack.c.b16 %v271, %v270
  %v341 = vpack.c.b16 %v273, %v272
  %v342 = vpack.c.b16 %v275, %v274
  %v343 = vpack.c.b16 %v277, %v276
  %v344 = vpack.c.b16 %v279, %v278
  %v345 = vpack.c.b16 %v281, %v280
  %v346 = vpack.c.b16 %v283, %v282
  %v347 = vpack.c.b16 %v285, %v284
  %v348 = vpack.c.b16 %v287, %v286
  %v349 = vpack.c.b16 %v289, %v288
  %v350 = vpack.c.b16 %v291, %v290
  %v351 = vpack.c.b16 %v293, %v292
  %v352 = vpack.c.b16 %v295, %v294
  %v353 = vpack.c.b16 %v297, %v296
  %v354 = vpack.c.b16 %v299, %v298
  %v355 = vpack.c.b16 %v301, %v300
  %v356 = vpack.c.b16 %v303, %v302
  %v357 = vpack.c.b16 %v305, %v304
  %v358 = vpack.c.b16 %v307, %v306
  %v359 = vpack.c.b16 %v309, %v308
  %v360 = vpack.c.b16 %v311, %v310
  %v361 = vpack.c.b16 %v313, %v312
  %v366 = vunpack.c.l.b16 %v111
  %v367 = vunpack.c.l.b16 %v112
  %v368 = vunpack.c.l.b16 %v113
  %v369 = vunpack.c.l.b16 %v114
  %v370 = vpack.c.b16 %v367, %v366
  %v371 = vpack.c.b16 %v369, %v368
  %vm374 = vcmask 261120
  %v376 = vsel %vm374, %v314, 0
  %v379 = vsel %vm374, %v315, 0
  %v382 = vsel %vm374, %v316, 0
  %v385 = vsel %vm374, %v317, 0
  %v388 = vsel %vm374, %v318, 0
  %v391 = vsel %vm374, %v319, 0
  %v394 = vsel %vm374, %v320, 0
  %v397 = vsel %vm374, %v321, 0
  %v400 = vsel %vm374, %v322, 0
  %v403 = vsel %vm374, %v323, 0
  %v406 = vsel %vm374, %v324, 0
  %v409 = vsel %vm374, %v325, 0
  %v412 = vsel %vm374, %v326, 0
  %v415 = vsel %vm374, %v327, 0
  %v418 = vsel %vm374, %v328, 0
  %v421 = vsel %vm374, %v329, 0
  %v424 = vsel %vm374, %v330, 0
  %v427 = vsel %vm374, %v331, 0
  %v430 = vsel %vm374, %v332, 0
  %v433 = vsel %vm374, %v333, 0
  %v436 = vsel %vm374, %v334, 0
  %v439 = vsel %vm374, %v335, 0
  %v442 = vsel %vm374, %v336, 0
  %v445 = vsel %vm374, %v337, 0
  %v448 = vsel %vm374, %v338, 0
  %v451 = vsel %vm374, %v339, 0
  %v454 = vsel %vm374, %v340, 0
  %v457 = vsel %vm374, %v341, 0
  %v460 = vsel %vm374, %v342, 0
  %v463 = vsel %vm374, %v343, 0
  %v466 = vsel %vm374, %v344, 0
  %v469 = vsel %vm374, %v345, 0
  %v472 = vsel %vm374, %v346, 0
  %v475 = vsel %vm374, %v347, 0
  %v478 = vsel %vm374, %v348, 0
  %v481 = vsel %vm374, %v349, 0
  %v484 = vsel %vm374, %v350, 0
  %v487 = vsel %vm374, %v351, 0
  %v490 = vsel %vm374, %v352, 0
  %v493 = vsel %vm374, %v353, 0
  %v496 = vsel %vm374, %v354, 0
  %v499 = vsel %vm374, %v355, 0
  %v502 = vsel %vm374, %v356, 0
  %v505 = vsel %vm374, %v357, 0
  %v508 = vsel %vm374, %v358, 0
  %v511 = vsel %vm374, %v359, 0
  %v514 = vsel %vm374, %v360, 0
  %v517 = vsel %vm374, %v361, 0
  %519 = vmatprep.subr.bf16.mxu0 0
  %520 = vmatpush1.bf16.msra.mxu0 %v370
  %521 = vmatprep.subr.bf16.mxu0 0
  %522 = vmatpush1.bf16.msra.mxu0 %v371
  %523 = vmatprep.subr.bf16.mxu0 0
  %524 = vmatpush1.bf16.msra.mxu0 0
  %525 = vmatprep.subr.bf16.mxu0 0
  %526 = vmatpush1.bf16.msra.mxu0 0
  %527 = vmatprep.subr.bf16.mxu0 0
  %528 = vmatpush1.bf16.msra.mxu0 0
  %529 = vmatprep.subr.bf16.mxu0 0
  %530 = vmatpush1.bf16.msra.mxu0 0
  %531 = vmatprep.subr.bf16.mxu0 0
  %532 = vmatpush1.bf16.msra.mxu0 0
  %533 = vmatprep.subr.bf16.mxu0 0
  %534 = vmatpush1.bf16.msra.mxu0 0
  %535 = vmatprep.subr.bf16.mxu0 0
  %536 = vmatpush1.bf16.msra.mxu0 0
  %537 = vmatprep.subr.bf16.mxu0 0
  %538 = vmatpush1.bf16.msra.mxu0 0
  %539 = vmatprep.subr.bf16.mxu0 0
  %540 = vmatpush1.bf16.msra.mxu0 0
  %541 = vmatprep.subr.bf16.mxu0 0
  %542 = vmatpush1.bf16.msra.mxu0 0
  %543 = vmatprep.subr.bf16.mxu0 0
  %544 = vmatpush1.bf16.msra.mxu0 0
  %545 = vmatprep.subr.bf16.mxu0 0
  %546 = vmatpush1.bf16.msra.mxu0 0
  %547 = vmatprep.subr.bf16.mxu0 0
  %548 = vmatpush1.bf16.msra.mxu0 0
  %549 = vmatprep.subr.bf16.mxu0 0
  %550 = vmatpush1.bf16.msra.mxu0 0
  %551 = vmatprep.mubr.bf16.mxu0 0
  %552 = vmatmul.mubr.bf16.gmra.mrb[0].mxu0 %v376
  %v553 = vpop.f32.mrb[0].mxu0
  %v554 = vadd.f32 %v120, %v553
  %v555 = vpop.f32.mrb[0].mxu0
  %v556 = vpop.f32.mrb[0].mxu0
  %v557 = vadd.f32 %v120, %v556
  %v558 = vpop.f32.mrb[0].mxu0
  %559 = vmatprep.mubr.bf16.mxu0 0
  %560 = vmatmul.mubr.bf16.gmra.mrb[0].mxu0 %v379
  %v561 = vpop.f32.mrb[0].mxu0
  %v562 = vadd.f32 %v120, %v561
  %v563 = vpop.f32.mrb[0].mxu0
  %v564 = vpop.f32.mrb[0].mxu0
  %v565 = vadd.f32 %v120, %v564
  %v566 = vpop.f32.mrb[0].mxu0
  %567 = vmatprep.mubr.bf16.mxu0 0
  %568 = vmatmul.mubr.bf16.gmra.mrb[0].mxu0 %v382
  %v569 = vpop.f32.mrb[0].mxu0
  %v570 = vadd.f32 %v120, %v569
  %v571 = vpop.f32.mrb[0].mxu0
  %v572 = vpop.f32.mrb[0].mxu0
  %v573 = vadd.f32 %v120, %v572
  %v574 = vpop.f32.mrb[0].mxu0
  %575 = vmatprep.mubr.bf16.mxu0 0
  %576 = vmatmul.mubr.bf16.gmra.mrb[0].mxu0 %v385
  %v577 = vpop.f32.mrb[0].mxu0
  %v578 = vadd.f32 %v120, %v577
  %v579 = vpop.f32.mrb[0].mxu0
  %v580 = vpop.f32.mrb[0].mxu0
  %v581 = vadd.f32 %v120, %v580
  %v582 = vpop.f32.mrb[0].mxu0
  %583 = vmatprep.mubr.bf16.mxu0 0
  %584 = vmatmul.mubr.bf16.gmra.mrb[0].mxu0 %v388
  %v585 = vpop.f32.mrb[0].mxu0
  %v586 = vadd.f32 %v120, %v585
  %v587 = vpop.f32.mrb[0].mxu0
  %v588 = vpop.f32.mrb[0].mxu0
  %v589 = vadd.f32 %v120, %v588
  %v590 = vpop.f32.mrb[0].mxu0
  %591 = vmatprep.mubr.bf16.mxu0 0
  %592 = vmatmul.mubr.bf16.gmra.mrb[0].mxu0 %v391
  %v593 = vpop.f32.mrb[0].mxu0
  %v594 = vadd.f32 %v120, %v593
  %v595 = vpop.f32.mrb[0].mxu0
  %v596 = vpop.f32.mrb[0].mxu0
  %v597 = vadd.f32 %v120, %v596
  %v598 = vpop.f32.mrb[0].mxu0
  %599 = vmatprep.mubr.bf16.mxu0 0
  %600 = vmatmul.mubr.bf16.gmra.mrb[0].mxu0 %v394
  %v601 = vpop.f32.mrb[0].mxu0
  %v602 = vadd.f32 %v120, %v601
  %v603 = vpop.f32.mrb[0].mxu0
  %v604 = vpop.f32.mrb[0].mxu0
  %v605 = vadd.f32 %v120, %v604
  %v606 = vpop.f32.mrb[0].mxu0
  %607 = vmatprep.mubr.bf16.mxu0 0
  %608 = vmatmul.mubr.bf16.gmra.mrb[0].mxu0 %v397
  %v609 = vpop.f32.mrb[0].mxu0
  %v610 = vadd.f32 %v120, %v609
  %v611 = vpop.f32.mrb[0].mxu0
  %v612 = vpop.f32.mrb[0].mxu0
  %v613 = vadd.f32 %v120, %v612
  %v614 = vpop.f32.mrb[0].mxu0
  %615 = vmatprep.mubr.bf16.mxu0 0
  %616 = vmatmul.mubr.bf16.gmra.mrb[0].mxu0 %v400
  %v617 = vpop.f32.mrb[0].mxu0
  %v618 = vadd.f32 %v120, %v617
  %v619 = vpop.f32.mrb[0].mxu0
  %v620 = vpop.f32.mrb[0].mxu0
  %v621 = vadd.f32 %v120, %v620
  %v622 = vpop.f32.mrb[0].mxu0
  %623 = vmatprep.mubr.bf16.mxu0 0
  %624 = vmatmul.mubr.bf16.gmra.mrb[0].mxu0 %v403
  %v625 = vpop.f32.mrb[0].mxu0
  %v626 = vadd.f32 %v120, %v625
  %v627 = vpop.f32.mrb[0].mxu0
  %v628 = vpop.f32.mrb[0].mxu0
  %v629 = vadd.f32 %v120, %v628
  %v630 = vpop.f32.mrb[0].mxu0
  %631 = vmatprep.mubr.bf16.mxu0 0
  %632 = vmatmul.mubr.bf16.gmra.mrb[0].mxu0 %v406
  %v633 = vpop.f32.mrb[0].mxu0
  %v634 = vadd.f32 %v120, %v633
  %v635 = vpop.f32.mrb[0].mxu0
  %v636 = vpop.f32.mrb[0].mxu0
  %v637 = vadd.f32 %v120, %v636
  %v638 = vpop.f32.mrb[0].mxu0
  %639 = vmatprep.mubr.bf16.mxu0 0
  %640 = vmatmul.mubr.bf16.gmra.mrb[0].mxu0 %v409
  %v641 = vpop.f32.mrb[0].mxu0
  %v642 = vadd.f32 %v120, %v641
  %v643 = vpop.f32.mrb[0].mxu0
  %v644 = vpop.f32.mrb[0].mxu0
  %v645 = vadd.f32 %v120, %v644
  %v646 = vpop.f32.mrb[0].mxu0
  %647 = vmatprep.mubr.bf16.mxu0 0
  %648 = vmatmul.mubr.bf16.gmra.mrb[0].mxu0 %v412
  %v649 = vpop.f32.mrb[0].mxu0
  %v650 = vadd.f32 %v120, %v649
  %v651 = vpop.f32.mrb[0].mxu0
  %v652 = vpop.f32.mrb[0].mxu0
  %v653 = vadd.f32 %v120, %v652
  %v654 = vpop.f32.mrb[0].mxu0
  %655 = vmatprep.mubr.bf16.mxu0 0
  %656 = vmatmul.mubr.bf16.gmra.mrb[0].mxu0 %v415
  %v657 = vpop.f32.mrb[0].mxu0
  %v658 = vadd.f32 %v120, %v657
  %v659 = vpop.f32.mrb[0].mxu0
  %v660 = vpop.f32.mrb[0].mxu0
  %v661 = vadd.f32 %v120, %v660
  %v662 = vpop.f32.mrb[0].mxu0
  %663 = vmatprep.mubr.bf16.mxu0 0
  %664 = vmatmul.mubr.bf16.gmra.mrb[0].mxu0 %v418
  %v665 = vpop.f32.mrb[0].mxu0
  %v666 = vadd.f32 %v120, %v665
  %v667 = vpop.f32.mrb[0].mxu0
  %v668 = vpop.f32.mrb[0].mxu0
  %v669 = vadd.f32 %v120, %v668
  %v670 = vpop.f32.mrb[0].mxu0
  %671 = vmatprep.mubr.bf16.mxu0 0
  %672 = vmatmul.mubr.bf16.gmra.mrb[0].mxu0 %v421
  %v673 = vpop.f32.mrb[0].mxu0
  %v674 = vadd.f32 %v120, %v673
  %v675 = vpop.f32.mrb[0].mxu0
  %v676 = vpop.f32.mrb[0].mxu0
  %v677 = vadd.f32 %v120, %v676
  %v678 = vpop.f32.mrb[0].mxu0
  %679 = vmatprep.mubr.bf16.mxu0 0
  %680 = vmatmul.mubr.bf16.gmra.mrb[0].mxu0 %v424
  %v681 = vpop.f32.mrb[0].mxu0
  %v682 = vadd.f32 %v120, %v681
  %v683 = vpop.f32.mrb[0].mxu0
  %v684 = vpop.f32.mrb[0].mxu0
  %v685 = vadd.f32 %v120, %v684
  %v686 = vpop.f32.mrb[0].mxu0
  %687 = vmatprep.mubr.bf16.mxu0 0
  %688 = vmatmul.mubr.bf16.gmra.mrb[0].mxu0 %v427
  %v689 = vpop.f32.mrb[0].mxu0
  %v690 = vadd.f32 %v120, %v689
  %v691 = vpop.f32.mrb[0].mxu0
  %v692 = vpop.f32.mrb[0].mxu0
  %v693 = vadd.f32 %v120, %v692
  %v694 = vpop.f32.mrb[0].mxu0
  %695 = vmatprep.mubr.bf16.mxu0 0
  %696 = vmatmul.mubr.bf16.gmra.mrb[0].mxu0 %v430
  %v697 = vpop.f32.mrb[0].mxu0
  %v698 = vadd.f32 %v120, %v697
  %v699 = vpop.f32.mrb[0].mxu0
  %v700 = vpop.f32.mrb[0].mxu0
  %v701 = vadd.f32 %v120, %v700
  %v702 = vpop.f32.mrb[0].mxu0
  %703 = vmatprep.mubr.bf16.mxu0 0
  %704 = vmatmul.mubr.bf16.gmra.mrb[0].mxu0 %v433
  %v705 = vpop.f32.mrb[0].mxu0
  %v706 = vadd.f32 %v120, %v705
  %v707 = vpop.f32.mrb[0].mxu0
  %v708 = vpop.f32.mrb[0].mxu0
  %v709 = vadd.f32 %v120, %v708
  %v710 = vpop.f32.mrb[0].mxu0
  %711 = vmatprep.mubr.bf16.mxu0 0
  %712 = vmatmul.mubr.bf16.gmra.mrb[0].mxu0 %v436
  %v713 = vpop.f32.mrb[0].mxu0
  %v714 = vadd.f32 %v120, %v713
  %v715 = vpop.f32.mrb[0].mxu0
  %v716 = vpop.f32.mrb[0].mxu0
  %v717 = vadd.f32 %v120, %v716
  %v718 = vpop.f32.mrb[0].mxu0
  %719 = vmatprep.mubr.bf16.mxu0 0
  %720 = vmatmul.mubr.bf16.gmra.mrb[0].mxu0 %v439
  %v721 = vpop.f32.mrb[0].mxu0
  %v722 = vadd.f32 %v120, %v721
  %v723 = vpop.f32.mrb[0].mxu0
  %v724 = vpop.f32.mrb[0].mxu0
  %v725 = vadd.f32 %v120, %v724
  %v726 = vpop.f32.mrb[0].mxu0
  %727 = vmatprep.mubr.bf16.mxu0 0
  %728 = vmatmul.mubr.bf16.gmra.mrb[0].mxu0 %v442
  %v729 = vpop.f32.mrb[0].mxu0
  %v730 = vadd.f32 %v120, %v729
  %v731 = vpop.f32.mrb[0].mxu0
  %v732 = vpop.f32.mrb[0].mxu0
  %v733 = vadd.f32 %v120, %v732
  %v734 = vpop.f32.mrb[0].mxu0
  %735 = vmatprep.mubr.bf16.mxu0 0
  %736 = vmatmul.mubr.bf16.gmra.mrb[0].mxu0 %v445
  %v737 = vpop.f32.mrb[0].mxu0
  %v738 = vadd.f32 %v120, %v737
  %v739 = vpop.f32.mrb[0].mxu0
  %v740 = vpop.f32.mrb[0].mxu0
  %v741 = vadd.f32 %v120, %v740
  %v742 = vpop.f32.mrb[0].mxu0
  %743 = vmatprep.mubr.bf16.mxu0 0
  %744 = vmatmul.mubr.bf16.gmra.mrb[0].mxu0 %v448
  %v745 = vpop.f32.mrb[0].mxu0
  %v746 = vadd.f32 %v120, %v745
  %v747 = vpop.f32.mrb[0].mxu0
  %v748 = vpop.f32.mrb[0].mxu0
  %v749 = vadd.f32 %v120, %v748
  %v750 = vpop.f32.mrb[0].mxu0
  %751 = vmatprep.mubr.bf16.mxu0 0
  %752 = vmatmul.mubr.bf16.gmra.mrb[0].mxu0 %v451
  %v753 = vpop.f32.mrb[0].mxu0
  %v754 = vadd.f32 %v120, %v753
  %v755 = vpop.f32.mrb[0].mxu0
  %v756 = vpop.f32.mrb[0].mxu0
  %v757 = vadd.f32 %v120, %v756
  %v758 = vpop.f32.mrb[0].mxu0
  %759 = vmatprep.mubr.bf16.mxu0 0
  %760 = vmatmul.mubr.bf16.gmra.mrb[0].mxu0 %v454
  %v761 = vpop.f32.mrb[0].mxu0
  %v762 = vadd.f32 %v120, %v761
  %v763 = vpop.f32.mrb[0].mxu0
  %v764 = vpop.f32.mrb[0].mxu0
  %v765 = vadd.f32 %v120, %v764
  %v766 = vpop.f32.mrb[0].mxu0
  %767 = vmatprep.mubr.bf16.mxu0 0
  %768 = vmatmul.mubr.bf16.gmra.mrb[0].mxu0 %v457
  %v769 = vpop.f32.mrb[0].mxu0
  %v770 = vadd.f32 %v120, %v769
  %v771 = vpop.f32.mrb[0].mxu0
  %v772 = vpop.f32.mrb[0].mxu0
  %v773 = vadd.f32 %v120, %v772
  %v774 = vpop.f32.mrb[0].mxu0
  %775 = vmatprep.mubr.bf16.mxu0 0
  %776 = vmatmul.mubr.bf16.gmra.mrb[0].mxu0 %v460
  %v777 = vpop.f32.mrb[0].mxu0
  %v778 = vadd.f32 %v120, %v777
  %v779 = vpop.f32.mrb[0].mxu0
  %v780 = vpop.f32.mrb[0].mxu0
  %v781 = vadd.f32 %v120, %v780
  %v782 = vpop.f32.mrb[0].mxu0
  %783 = vmatprep.mubr.bf16.mxu0 0
  %784 = vmatmul.mubr.bf16.gmra.mrb[0].mxu0 %v463
  %v785 = vpop.f32.mrb[0].mxu0
  %v786 = vadd.f32 %v120, %v785
  %v787 = vpop.f32.mrb[0].mxu0
  %v788 = vpop.f32.mrb[0].mxu0
  %v789 = vadd.f32 %v120, %v788
  %v790 = vpop.f32.mrb[0].mxu0
  %791 = vmatprep.mubr.bf16.mxu0 0
  %792 = vmatmul.mubr.bf16.gmra.mrb[0].mxu0 %v466
  %v793 = vpop.f32.mrb[0].mxu0
  %v794 = vadd.f32 %v120, %v793
  %v795 = vpop.f32.mrb[0].mxu0
  %v796 = vpop.f32.mrb[0].mxu0
  %v797 = vadd.f32 %v120, %v796
  %v798 = vpop.f32.mrb[0].mxu0
  %799 = vmatprep.mubr.bf16.mxu0 0
  %800 = vmatmul.mubr.bf16.gmra.mrb[0].mxu0 %v469
  %v801 = vpop.f32.mrb[0].mxu0
  %v802 = vadd.f32 %v120, %v801
  %v803 = vpop.f32.mrb[0].mxu0
  %v804 = vpop.f32.mrb[0].mxu0
  %v805 = vadd.f32 %v120, %v804
  %v806 = vpop.f32.mrb[0].mxu0
  %807 = vmatprep.mubr.bf16.mxu0 0
  %808 = vmatmul.mubr.bf16.gmra.mrb[0].mxu0 %v472
  %v809 = vpop.f32.mrb[0].mxu0
  %v810 = vadd.f32 %v120, %v809
  %v811 = vpop.f32.mrb[0].mxu0
  %v812 = vpop.f32.mrb[0].mxu0
  %v813 = vadd.f32 %v120, %v812
  %v814 = vpop.f32.mrb[0].mxu0
  %815 = vmatprep.mubr.bf16.mxu0 0
  %816 = vmatmul.mubr.bf16.gmra.mrb[0].mxu0 %v475
  %v817 = vpop.f32.mrb[0].mxu0
  %v818 = vadd.f32 %v120, %v817
  %v819 = vpop.f32.mrb[0].mxu0
  %v820 = vpop.f32.mrb[0].mxu0
  %v821 = vadd.f32 %v120, %v820
  %v822 = vpop.f32.mrb[0].mxu0
  %823 = vmatprep.mubr.bf16.mxu0 0
  %824 = vmatmul.mubr.bf16.gmra.mrb[0].mxu0 %v478
  %v825 = vpop.f32.mrb[0].mxu0
  %v826 = vadd.f32 %v120, %v825
  %v827 = vpop.f32.mrb[0].mxu0
  %v828 = vpop.f32.mrb[0].mxu0
  %v829 = vadd.f32 %v120, %v828
  %v830 = vpop.f32.mrb[0].mxu0
  %831 = vmatprep.mubr.bf16.mxu0 0
  %832 = vmatmul.mubr.bf16.gmra.mrb[0].mxu0 %v481
  %v833 = vpop.f32.mrb[0].mxu0
  %v834 = vadd.f32 %v120, %v833
  %v835 = vpop.f32.mrb[0].mxu0
  %v836 = vpop.f32.mrb[0].mxu0
  %v837 = vadd.f32 %v120, %v836
  %v838 = vpop.f32.mrb[0].mxu0
  %839 = vmatprep.mubr.bf16.mxu0 0
  %840 = vmatmul.mubr.bf16.gmra.mrb[0].mxu0 %v484
  %v841 = vpop.f32.mrb[0].mxu0
  %v842 = vadd.f32 %v120, %v841
  %v843 = vpop.f32.mrb[0].mxu0
  %v844 = vpop.f32.mrb[0].mxu0
  %v845 = vadd.f32 %v120, %v844
  %v846 = vpop.f32.mrb[0].mxu0
  %847 = vmatprep.mubr.bf16.mxu0 0
  %848 = vmatmul.mubr.bf16.gmra.mrb[0].mxu0 %v487
  %v849 = vpop.f32.mrb[0].mxu0
  %v850 = vadd.f32 %v120, %v849
  %v851 = vpop.f32.mrb[0].mxu0
  %v852 = vpop.f32.mrb[0].mxu0
  %v853 = vadd.f32 %v120, %v852
  %v854 = vpop.f32.mrb[0].mxu0
  %855 = vmatprep.mubr.bf16.mxu0 0
  %856 = vmatmul.mubr.bf16.gmra.mrb[0].mxu0 %v490
  %v857 = vpop.f32.mrb[0].mxu0
  %v858 = vadd.f32 %v120, %v857
  %v859 = vpop.f32.mrb[0].mxu0
  %v860 = vpop.f32.mrb[0].mxu0
  %v861 = vadd.f32 %v120, %v860
  %v862 = vpop.f32.mrb[0].mxu0
  %863 = vmatprep.mubr.bf16.mxu0 0
  %864 = vmatmul.mubr.bf16.gmra.mrb[0].mxu0 %v493
  %v865 = vpop.f32.mrb[0].mxu0
  %v866 = vadd.f32 %v120, %v865
  %v867 = vpop.f32.mrb[0].mxu0
  %v868 = vpop.f32.mrb[0].mxu0
  %v869 = vadd.f32 %v120, %v868
  %v870 = vpop.f32.mrb[0].mxu0
  %871 = vmatprep.mubr.bf16.mxu0 0
  %872 = vmatmul.mubr.bf16.gmra.mrb[0].mxu0 %v496
  %v873 = vpop.f32.mrb[0].mxu0
  %v874 = vadd.f32 %v120, %v873
  %v875 = vpop.f32.mrb[0].mxu0
  %v876 = vpop.f32.mrb[0].mxu0
  %v877 = vadd.f32 %v120, %v876
  %v878 = vpop.f32.mrb[0].mxu0
  %879 = vmatprep.mubr.bf16.mxu0 0
  %880 = vmatmul.mubr.bf16.gmra.mrb[0].mxu0 %v499
  %v881 = vpop.f32.mrb[0].mxu0
  %v882 = vadd.f32 %v120, %v881
  %v883 = vpop.f32.mrb[0].mxu0
  %v884 = vpop.f32.mrb[0].mxu0
  %v885 = vadd.f32 %v120, %v884
  %v886 = vpop.f32.mrb[0].mxu0
  %887 = vmatprep.mubr.bf16.mxu0 0
  %888 = vmatmul.mubr.bf16.gmra.mrb[0].mxu0 %v502
  %v889 = vpop.f32.mrb[0].mxu0
  %v890 = vadd.f32 %v120, %v889
  %v891 = vpop.f32.mrb[0].mxu0
  %v892 = vpop.f32.mrb[0].mxu0
  %v893 = vadd.f32 %v120, %v892
  %v894 = vpop.f32.mrb[0].mxu0
  %895 = vmatprep.mubr.bf16.mxu0 0
  %896 = vmatmul.mubr.bf16.gmra.mrb[0].mxu0 %v505
  %v897 = vpop.f32.mrb[0].mxu0
  %v898 = vadd.f32 %v120, %v897
  %v899 = vpop.f32.mrb[0].mxu0
  %v900 = vpop.f32.mrb[0].mxu0
  %v901 = vadd.f32 %v120, %v900
  %v902 = vpop.f32.mrb[0].mxu0
  %903 = vmatprep.mubr.bf16.mxu0 0
  %904 = vmatmul.mubr.bf16.gmra.mrb[0].mxu0 %v508
  %v905 = vpop.f32.mrb[0].mxu0
  %v906 = vadd.f32 %v120, %v905
  %v907 = vpop.f32.mrb[0].mxu0
  %v908 = vpop.f32.mrb[0].mxu0
  %v909 = vadd.f32 %v120, %v908
  %v910 = vpop.f32.mrb[0].mxu0
  %911 = vmatprep.mubr.bf16.mxu0 0
  %912 = vmatmul.mubr.bf16.gmra.mrb[0].mxu0 %v511
  %v913 = vpop.f32.mrb[0].mxu0
  %v914 = vadd.f32 %v120, %v913
  %v915 = vpop.f32.mrb[0].mxu0
  %v916 = vpop.f32.mrb[0].mxu0
  %v917 = vadd.f32 %v120, %v916
  %v918 = vpop.f32.mrb[0].mxu0
  %919 = vmatprep.mubr.bf16.mxu0 0
  %920 = vmatmul.mubr.bf16.gmra.mrb[0].mxu0 %v514
  %v921 = vpop.f32.mrb[0].mxu0
  %v922 = vadd.f32 %v120, %v921
  %v923 = vpop.f32.mrb[0].mxu0
  %v924 = vpop.f32.mrb[0].mxu0
  %v925 = vadd.f32 %v120, %v924
  %v926 = vpop.f32.mrb[0].mxu0
  %927 = vmatprep.mubr.bf16.mxu0 0
  %928 = vmatmul.mubr.bf16.gmra.mrb[0].mxu0 %v517
  %v929 = vpop.f32.mrb[0].mxu0
  %v930 = vadd.f32 %v120, %v929
  %v931 = vpop.f32.mrb[0].mxu0
  %v932 = vpop.f32.mrb[0].mxu0
  %v933 = vadd.f32 %v120, %v932
  %v934 = vpop.f32.mrb[0].mxu0
  %935 = vdwg.mxu0
  %v936 = vmax.f32 %v554, 0.0
  %v937 = vmax.f32 %v557, 0.0
  %v938 = vmax.f32 %v562, 0.0
  %v939 = vmax.f32 %v565, 0.0
  %v940 = vmax.f32 %v570, 0.0
  %v941 = vmax.f32 %v573, 0.0
  %v942 = vmax.f32 %v578, 0.0
  %v943 = vmax.f32 %v581, 0.0
  %v944 = vmax.f32 %v586, 0.0
  %v945 = vmax.f32 %v589, 0.0
  %v946 = vmax.f32 %v594, 0.0
  %v947 = vmax.f32 %v597, 0.0
  %v948 = vmax.f32 %v602, 0.0
  %v949 = vmax.f32 %v605, 0.0
  %v950 = vmax.f32 %v610, 0.0
  %v951 = vmax.f32 %v613, 0.0
  %v952 = vmax.f32 %v618, 0.0
  %v953 = vmax.f32 %v621, 0.0
  %v954 = vmax.f32 %v626, 0.0
  %v955 = vmax.f32 %v629, 0.0
  %v956 = vmax.f32 %v634, 0.0
  %v957 = vmax.f32 %v637, 0.0
  %v958 = vmax.f32 %v642, 0.0
  %v959 = vmax.f32 %v645, 0.0
  %v960 = vmax.f32 %v650, 0.0
  %v961 = vmax.f32 %v653, 0.0
  %v962 = vmax.f32 %v658, 0.0
  %v963 = vmax.f32 %v661, 0.0
  %v964 = vmax.f32 %v666, 0.0
  %v965 = vmax.f32 %v669, 0.0
  %v966 = vmax.f32 %v674, 0.0
  %v967 = vmax.f32 %v677, 0.0
  %v968 = vmax.f32 %v682, 0.0
  %v969 = vmax.f32 %v685, 0.0
  %v970 = vmax.f32 %v690, 0.0
  %v971 = vmax.f32 %v693, 0.0
  %v972 = vmax.f32 %v698, 0.0
  %v973 = vmax.f32 %v701, 0.0
  %v974 = vmax.f32 %v706, 0.0
  %v975 = vmax.f32 %v709, 0.0
  %v976 = vmax.f32 %v714, 0.0
  %v977 = vmax.f32 %v717, 0.0
  %v978 = vmax.f32 %v722, 0.0
  %v979 = vmax.f32 %v725, 0.0
  %v980 = vmax.f32 %v730, 0.0
  %v981 = vmax.f32 %v733, 0.0
  %v982 = vmax.f32 %v738, 0.0
  %v983 = vmax.f32 %v741, 0.0
  %v984 = vmax.f32 %v746, 0.0
  %v985 = vmax.f32 %v749, 0.0
  %v986 = vmax.f32 %v754, 0.0
  %v987 = vmax.f32 %v757, 0.0
  %v988 = vmax.f32 %v762, 0.0
  %v989 = vmax.f32 %v765, 0.0
  %v990 = vmax.f32 %v770, 0.0
  %v991 = vmax.f32 %v773, 0.0
  %v992 = vmax.f32 %v778, 0.0
  %v993 = vmax.f32 %v781, 0.0
  %v994 = vmax.f32 %v786, 0.0
  %v995 = vmax.f32 %v789, 0.0
  %v996 = vmax.f32 %v794, 0.0
  %v997 = vmax.f32 %v797, 0.0
  %v998 = vmax.f32 %v802, 0.0
  %v999 = vmax.f32 %v805, 0.0
  %v1000 = vmax.f32 %v810, 0.0
  %v1001 = vmax.f32 %v813, 0.0
  %v1002 = vmax.f32 %v818, 0.0
  %v1003 = vmax.f32 %v821, 0.0
  %v1004 = vmax.f32 %v826, 0.0
  %v1005 = vmax.f32 %v829, 0.0
  %v1006 = vmax.f32 %v834, 0.0
  %v1007 = vmax.f32 %v837, 0.0
  %v1008 = vmax.f32 %v842, 0.0
  %v1009 = vmax.f32 %v845, 0.0
  %v1010 = vmax.f32 %v850, 0.0
  %v1011 = vmax.f32 %v853, 0.0
  %v1012 = vmax.f32 %v858, 0.0
  %v1013 = vmax.f32 %v861, 0.0
  %v1014 = vmax.f32 %v866, 0.0
  %v1015 = vmax.f32 %v869, 0.0
  %v1016 = vmax.f32 %v874, 0.0
  %v1017 = vmax.f32 %v877, 0.0
  %v1018 = vmax.f32 %v882, 0.0
  %v1019 = vmax.f32 %v885, 0.0
  %v1020 = vmax.f32 %v890, 0.0
  %v1021 = vmax.f32 %v893, 0.0
  %v1022 = vmax.f32 %v898, 0.0
  %v1023 = vmax.f32 %v901, 0.0
  %v1024 = vmax.f32 %v906, 0.0
  %v1025 = vmax.f32 %v909, 0.0
  %v1026 = vmax.f32 %v914, 0.0
  %v1027 = vmax.f32 %v917, 0.0
  %v1028 = vmax.f32 %v922, 0.0
  %v1029 = vmax.f32 %v925, 0.0
  %v1030 = vmax.f32 %v930, 0.0
  %v1031 = vmax.f32 %v933, 0.0
  %v1032 = vpack.c.bf16 %v937, %v936
  %v1033 = vpack.c.bf16 %v939, %v938
  %v1034 = vpack.c.bf16 %v941, %v940
  %v1035 = vpack.c.bf16 %v943, %v942
  %v1036 = vpack.c.bf16 %v945, %v944
  %v1037 = vpack.c.bf16 %v947, %v946
  %v1038 = vpack.c.bf16 %v949, %v948
  %v1039 = vpack.c.bf16 %v951, %v950
  %v1040 = vpack.c.bf16 %v953, %v952
  %v1041 = vpack.c.bf16 %v955, %v954
  %v1042 = vpack.c.bf16 %v957, %v956
  %v1043 = vpack.c.bf16 %v959, %v958
  %v1044 = vpack.c.bf16 %v961, %v960
  %v1045 = vpack.c.bf16 %v963, %v962
  %v1046 = vpack.c.bf16 %v965, %v964
  %v1047 = vpack.c.bf16 %v967, %v966
  %v1048 = vpack.c.bf16 %v969, %v968
  %v1049 = vpack.c.bf16 %v971, %v970
  %v1050 = vpack.c.bf16 %v973, %v972
  %v1051 = vpack.c.bf16 %v975, %v974
  %v1052 = vpack.c.bf16 %v977, %v976
  %v1053 = vpack.c.bf16 %v979, %v978
  %v1054 = vpack.c.bf16 %v981, %v980
  %v1055 = vpack.c.bf16 %v983, %v982
  %v1056 = vpack.c.bf16 %v985, %v984
  %v1057 = vpack.c.bf16 %v987, %v986
  %v1058 = vpack.c.bf16 %v989, %v988
  %v1059 = vpack.c.bf16 %v991, %v990
  %v1060 = vpack.c.bf16 %v993, %v992
  %v1061 = vpack.c.bf16 %v995, %v994
  %v1062 = vpack.c.bf16 %v997, %v996
  %v1063 = vpack.c.bf16 %v999, %v998
  %v1064 = vpack.c.bf16 %v1001, %v1000
  %v1065 = vpack.c.bf16 %v1003, %v1002
  %v1066 = vpack.c.bf16 %v1005, %v1004
  %v1067 = vpack.c.bf16 %v1007, %v1006
  %v1068 = vpack.c.bf16 %v1009, %v1008
  %v1069 = vpack.c.bf16 %v1011, %v1010
  %v1070 = vpack.c.bf16 %v1013, %v1012
  %v1071 = vpack.c.bf16 %v1015, %v1014
  %v1072 = vpack.c.bf16 %v1017, %v1016
  %v1073 = vpack.c.bf16 %v1019, %v1018
  %v1074 = vpack.c.bf16 %v1021, %v1020
  %v1075 = vpack.c.bf16 %v1023, %v1022
  %v1076 = vpack.c.bf16 %v1025, %v1024
  %v1077 = vpack.c.bf16 %v1027, %v1026
  %v1078 = vpack.c.bf16 %v1029, %v1028
  %v1079 = vpack.c.bf16 %v1031, %v1030
  %v1128 = vunpack.c.l.b16 %v1032
  %v1129 = vunpack.c.h.b16 %v1032
  %v1130 = vunpack.c.l.b16 %v1033
  %v1131 = vunpack.c.h.b16 %v1033
  %v1132 = vunpack.c.l.b16 %v1034
  %v1133 = vunpack.c.h.b16 %v1034
  %v1134 = vunpack.c.l.b16 %v1035
  %v1135 = vunpack.c.h.b16 %v1035
  %v1136 = vunpack.c.l.b16 %v1036
  %v1137 = vunpack.c.h.b16 %v1036
  %v1138 = vunpack.c.l.b16 %v1037
  %v1139 = vunpack.c.h.b16 %v1037
  %v1140 = vunpack.c.l.b16 %v1038
  %v1141 = vunpack.c.h.b16 %v1038
  %v1142 = vunpack.c.l.b16 %v1039
  %v1143 = vunpack.c.h.b16 %v1039
  %v1144 = vunpack.c.l.b16 %v1040
  %v1145 = vunpack.c.h.b16 %v1040
  %v1146 = vunpack.c.l.b16 %v1041
  %v1147 = vunpack.c.h.b16 %v1041
  %v1148 = vunpack.c.l.b16 %v1042
  %v1149 = vunpack.c.h.b16 %v1042
  %v1150 = vunpack.c.l.b16 %v1043
  %v1151 = vunpack.c.h.b16 %v1043
  %v1152 = vunpack.c.l.b16 %v1044
  %v1153 = vunpack.c.h.b16 %v1044
  %v1154 = vunpack.c.l.b16 %v1045
  %v1155 = vunpack.c.h.b16 %v1045
  %v1156 = vunpack.c.l.b16 %v1046
  %v1157 = vunpack.c.h.b16 %v1046
  %v1158 = vunpack.c.l.b16 %v1047
  %v1159 = vunpack.c.h.b16 %v1047
  %v1160 = vunpack.c.l.b16 %v1048
  %v1161 = vunpack.c.h.b16 %v1048
  %v1162 = vunpack.c.l.b16 %v1049
  %v1163 = vunpack.c.h.b16 %v1049
  %v1164 = vunpack.c.l.b16 %v1050
  %v1165 = vunpack.c.h.b16 %v1050
  %v1166 = vunpack.c.l.b16 %v1051
  %v1167 = vunpack.c.h.b16 %v1051
  %v1168 = vunpack.c.l.b16 %v1052
  %v1169 = vunpack.c.h.b16 %v1052
  %v1170 = vunpack.c.l.b16 %v1053
  %v1171 = vunpack.c.h.b16 %v1053
  %v1172 = vunpack.c.l.b16 %v1054
  %v1173 = vunpack.c.h.b16 %v1054
  %v1174 = vunpack.c.l.b16 %v1055
  %v1175 = vunpack.c.h.b16 %v1055
  %v1176 = vunpack.c.l.b16 %v1056
  %v1177 = vunpack.c.h.b16 %v1056
  %v1178 = vunpack.c.l.b16 %v1057
  %v1179 = vunpack.c.h.b16 %v1057
  %v1180 = vunpack.c.l.b16 %v1058
  %v1181 = vunpack.c.h.b16 %v1058
  %v1182 = vunpack.c.l.b16 %v1059
  %v1183 = vunpack.c.h.b16 %v1059
  %v1184 = vunpack.c.l.b16 %v1060
  %v1185 = vunpack.c.h.b16 %v1060
  %v1186 = vunpack.c.l.b16 %v1061
  %v1187 = vunpack.c.h.b16 %v1061
  %v1188 = vunpack.c.l.b16 %v1062
  %v1189 = vunpack.c.h.b16 %v1062
  %v1190 = vunpack.c.l.b16 %v1063
  %v1191 = vunpack.c.h.b16 %v1063
  %v1192 = vunpack.c.l.b16 %v1064
  %v1193 = vunpack.c.h.b16 %v1064
  %v1194 = vunpack.c.l.b16 %v1065
  %v1195 = vunpack.c.h.b16 %v1065
  %v1196 = vunpack.c.l.b16 %v1066
  %v1197 = vunpack.c.h.b16 %v1066
  %v1198 = vunpack.c.l.b16 %v1067
  %v1199 = vunpack.c.h.b16 %v1067
  %v1200 = vunpack.c.l.b16 %v1068
  %v1201 = vunpack.c.h.b16 %v1068
  %v1202 = vunpack.c.l.b16 %v1069
  %v1203 = vunpack.c.h.b16 %v1069
  %v1204 = vunpack.c.l.b16 %v1070
  %v1205 = vunpack.c.h.b16 %v1070
  %v1206 = vunpack.c.l.b16 %v1071
  %v1207 = vunpack.c.h.b16 %v1071
  %v1208 = vunpack.c.l.b16 %v1072
  %v1209 = vunpack.c.h.b16 %v1072
  %v1210 = vunpack.c.l.b16 %v1073
  %v1211 = vunpack.c.h.b16 %v1073
  %v1212 = vunpack.c.l.b16 %v1074
  %v1213 = vunpack.c.h.b16 %v1074
  %v1214 = vunpack.c.l.b16 %v1075
  %v1215 = vunpack.c.h.b16 %v1075
  %v1216 = vunpack.c.l.b16 %v1076
  %v1217 = vunpack.c.h.b16 %v1076
  %v1218 = vunpack.c.l.b16 %v1077
  %v1219 = vunpack.c.h.b16 %v1077
  %v1220 = vunpack.c.l.b16 %v1078
  %v1221 = vunpack.c.h.b16 %v1078
  %v1222 = vunpack.c.l.b16 %v1079
  %v1223 = vunpack.c.h.b16 %v1079
  %v1224 = vpack.c.b16 %v1128, %v1128
  %v1225 = vpack.c.b16 %v1129, %v1129
  %v1226 = vpack.c.b16 %v1130, %v1130
  %v1227 = vpack.c.b16 %v1131, %v1131
  %v1228 = vpack.c.b16 %v1132, %v1132
  %v1229 = vpack.c.b16 %v1133, %v1133
  %v1230 = vpack.c.b16 %v1134, %v1134
  %v1231 = vpack.c.b16 %v1135, %v1135
  %v1232 = vpack.c.b16 %v1136, %v1136
  %v1233 = vpack.c.b16 %v1137, %v1137
  %v1234 = vpack.c.b16 %v1138, %v1138
  %v1235 = vpack.c.b16 %v1139, %v1139
  %v1236 = vpack.c.b16 %v1140, %v1140
  %v1237 = vpack.c.b16 %v1141, %v1141
  %v1238 = vpack.c.b16 %v1142, %v1142
  %v1239 = vpack.c.b16 %v1143, %v1143
  %v1240 = vpack.c.b16 %v1144, %v1144
  %v1241 = vpack.c.b16 %v1145, %v1145
  %v1242 = vpack.c.b16 %v1146, %v1146
  %v1243 = vpack.c.b16 %v1147, %v1147
  %v1244 = vpack.c.b16 %v1148, %v1148
  %v1245 = vpack.c.b16 %v1149, %v1149
  %v1246 = vpack.c.b16 %v1150, %v1150
  %v1247 = vpack.c.b16 %v1151, %v1151
  %v1248 = vpack.c.b16 %v1152, %v1152
  %v1249 = vpack.c.b16 %v1153, %v1153
  %v1250 = vpack.c.b16 %v1154, %v1154
  %v1251 = vpack.c.b16 %v1155, %v1155
  %v1252 = vpack.c.b16 %v1156, %v1156
  %v1253 = vpack.c.b16 %v1157, %v1157
  %v1254 = vpack.c.b16 %v1158, %v1158
  %v1255 = vpack.c.b16 %v1159, %v1159
  %v1256 = vpack.c.b16 %v1160, %v1160
  %v1257 = vpack.c.b16 %v1161, %v1161
  %v1258 = vpack.c.b16 %v1162, %v1162
  %v1259 = vpack.c.b16 %v1163, %v1163
  %v1260 = vpack.c.b16 %v1164, %v1164
  %v1261 = vpack.c.b16 %v1165, %v1165
  %v1262 = vpack.c.b16 %v1166, %v1166
  %v1263 = vpack.c.b16 %v1167, %v1167
  %v1264 = vpack.c.b16 %v1168, %v1168
  %v1265 = vpack.c.b16 %v1169, %v1169
  %v1266 = vpack.c.b16 %v1170, %v1170
  %v1267 = vpack.c.b16 %v1171, %v1171
  %v1268 = vpack.c.b16 %v1172, %v1172
  %v1269 = vpack.c.b16 %v1173, %v1173
  %v1270 = vpack.c.b16 %v1174, %v1174
  %v1271 = vpack.c.b16 %v1175, %v1175
  %v1272 = vpack.c.b16 %v1176, %v1176
  %v1273 = vpack.c.b16 %v1177, %v1177
  %v1274 = vpack.c.b16 %v1178, %v1178
  %v1275 = vpack.c.b16 %v1179, %v1179
  %v1276 = vpack.c.b16 %v1180, %v1180
  %v1277 = vpack.c.b16 %v1181, %v1181
  %v1278 = vpack.c.b16 %v1182, %v1182
  %v1279 = vpack.c.b16 %v1183, %v1183
  %v1280 = vpack.c.b16 %v1184, %v1184
  %v1281 = vpack.c.b16 %v1185, %v1185
  %v1282 = vpack.c.b16 %v1186, %v1186
  %v1283 = vpack.c.b16 %v1187, %v1187
  %v1284 = vpack.c.b16 %v1188, %v1188
  %v1285 = vpack.c.b16 %v1189, %v1189
  %v1286 = vpack.c.b16 %v1190, %v1190
  %v1287 = vpack.c.b16 %v1191, %v1191
  %v1288 = vpack.c.b16 %v1192, %v1192
  %v1289 = vpack.c.b16 %v1193, %v1193
  %v1290 = vpack.c.b16 %v1194, %v1194
  %v1291 = vpack.c.b16 %v1195, %v1195
  %v1292 = vpack.c.b16 %v1196, %v1196
  %v1293 = vpack.c.b16 %v1197, %v1197
  %v1294 = vpack.c.b16 %v1198, %v1198
  %v1295 = vpack.c.b16 %v1199, %v1199
  %v1296 = vpack.c.b16 %v1200, %v1200
  %v1297 = vpack.c.b16 %v1201, %v1201
  %v1298 = vpack.c.b16 %v1202, %v1202
  %v1299 = vpack.c.b16 %v1203, %v1203
  %v1300 = vpack.c.b16 %v1204, %v1204
  %v1301 = vpack.c.b16 %v1205, %v1205
  %v1302 = vpack.c.b16 %v1206, %v1206
  %v1303 = vpack.c.b16 %v1207, %v1207
  %v1304 = vpack.c.b16 %v1208, %v1208
  %v1305 = vpack.c.b16 %v1209, %v1209
  %v1306 = vpack.c.b16 %v1210, %v1210
  %v1307 = vpack.c.b16 %v1211, %v1211
  %v1308 = vpack.c.b16 %v1212, %v1212
  %v1309 = vpack.c.b16 %v1213, %v1213
  %v1310 = vpack.c.b16 %v1214, %v1214
  %v1311 = vpack.c.b16 %v1215, %v1215
  %v1312 = vpack.c.b16 %v1216, %v1216
  %v1313 = vpack.c.b16 %v1217, %v1217
  %v1314 = vpack.c.b16 %v1218, %v1218
  %v1315 = vpack.c.b16 %v1219, %v1219
  %v1316 = vpack.c.b16 %v1220, %v1220
  %v1317 = vpack.c.b16 %v1221, %v1221
  %v1318 = vpack.c.b16 %v1222, %v1222
  %v1319 = vpack.c.b16 %v1223, %v1223
  %vm1416 = vcmask 257024
  %1417 = vst.msk [vmem:[%s3] sm:$0xf] %vm1416, %v1224
  %1418 = vst.msk [vmem:[%s3 + $0x4] sm:$0xf] %vm1416, %v1225
  %1419 = vst.msk [vmem:[%s3 + $0x8] sm:$0xf] %vm1416, %v1226
  %1420 = vst.msk [vmem:[%s3 + $0xc] sm:$0xf] %vm1416, %v1227
  %1421 = vst.msk [vmem:[%s3 + $0x10] sm:$0xf] %vm1416, %v1228
  %1422 = vst.msk [vmem:[%s3 + $0x14] sm:$0xf] %vm1416, %v1229
  %1423 = vst.msk [vmem:[%s3 + $0x18] sm:$0xf] %vm1416, %v1230
  %1424 = vst.msk [vmem:[%s3 + $0x1c] sm:$0xf] %vm1416, %v1231
  %1425 = vst.msk [vmem:[%s3 + $0x20] sm:$0xf] %vm1416, %v1232
  %1426 = vst.msk [vmem:[%s3 + $0x24] sm:$0xf] %vm1416, %v1233
  %1427 = vst.msk [vmem:[%s3 + $0x28] sm:$0xf] %vm1416, %v1234
  %1428 = vst.msk [vmem:[%s3 + $0x2c] sm:$0xf] %vm1416, %v1235
  %1429 = vst.msk [vmem:[%s3 + $0x30] sm:$0xf] %vm1416, %v1236
  %1430 = vst.msk [vmem:[%s3 + $0x34] sm:$0xf] %vm1416, %v1237
  %1431 = vst.msk [vmem:[%s3 + $0x38] sm:$0xf] %vm1416, %v1238
  %1432 = vst.msk [vmem:[%s3 + $0x3c] sm:$0xf] %vm1416, %v1239
  %1433 = vst.msk [vmem:[%s3 + $0x40] sm:$0xf] %vm1416, %v1240
  %1434 = vst.msk [vmem:[%s3 + $0x44] sm:$0xf] %vm1416, %v1241
  %1435 = vst.msk [vmem:[%s3 + $0x48] sm:$0xf] %vm1416, %v1242
  %1436 = vst.msk [vmem:[%s3 + $0x4c] sm:$0xf] %vm1416, %v1243
  %1437 = vst.msk [vmem:[%s3 + $0x50] sm:$0xf] %vm1416, %v1244
  %1438 = vst.msk [vmem:[%s3 + $0x54] sm:$0xf] %vm1416, %v1245
  %1439 = vst.msk [vmem:[%s3 + $0x58] sm:$0xf] %vm1416, %v1246
  %1440 = vst.msk [vmem:[%s3 + $0x5c] sm:$0xf] %vm1416, %v1247
  %1441 = vst.msk [vmem:[%s3 + $0x60] sm:$0xf] %vm1416, %v1248
  %1442 = vst.msk [vmem:[%s3 + $0x64] sm:$0xf] %vm1416, %v1249
  %1443 = vst.msk [vmem:[%s3 + $0x68] sm:$0xf] %vm1416, %v1250
  %1444 = vst.msk [vmem:[%s3 + $0x6c] sm:$0xf] %vm1416, %v1251
  %1445 = vst.msk [vmem:[%s3 + $0x70] sm:$0xf] %vm1416, %v1252
  %1446 = vst.msk [vmem:[%s3 + $0x74] sm:$0xf] %vm1416, %v1253
  %1447 = vst.msk [vmem:[%s3 + $0x78] sm:$0xf] %vm1416, %v1254
  %1448 = vst.msk [vmem:[%s3 + $0x7c] sm:$0xf] %vm1416, %v1255
  %1449 = vst.msk [vmem:[%s3 + $0x80] sm:$0xf] %vm1416, %v1256
  %1450 = vst.msk [vmem:[%s3 + $0x84] sm:$0xf] %vm1416, %v1257
  %1451 = vst.msk [vmem:[%s3 + $0x88] sm:$0xf] %vm1416, %v1258
  %1452 = vst.msk [vmem:[%s3 + $0x8c] sm:$0xf] %vm1416, %v1259
  %1453 = vst.msk [vmem:[%s3 + $0x90] sm:$0xf] %vm1416, %v1260
  %1454 = vst.msk [vmem:[%s3 + $0x94] sm:$0xf] %vm1416, %v1261
  %1455 = vst.msk [vmem:[%s3 + $0x98] sm:$0xf] %vm1416, %v1262
  %1456 = vst.msk [vmem:[%s3 + $0x9c] sm:$0xf] %vm1416, %v1263
  %1457 = vst.msk [vmem:[%s3 + $0xa0] sm:$0xf] %vm1416, %v1264
  %1458 = vst.msk [vmem:[%s3 + $0xa4] sm:$0xf] %vm1416, %v1265
  %1459 = vst.msk [vmem:[%s3 + $0xa8] sm:$0xf] %vm1416, %v1266
  %1460 = vst.msk [vmem:[%s3 + $0xac] sm:$0xf] %vm1416, %v1267
  %1461 = vst.msk [vmem:[%s3 + $0xb0] sm:$0xf] %vm1416, %v1268
  %1462 = vst.msk [vmem:[%s3 + $0xb4] sm:$0xf] %vm1416, %v1269
  %1463 = vst.msk [vmem:[%s3 + $0xb8] sm:$0xf] %vm1416, %v1270
  %1464 = vst.msk [vmem:[%s3 + $0xbc] sm:$0xf] %vm1416, %v1271
  %1465 = vst.msk [vmem:[%s3 + $0xc0] sm:$0xf] %vm1416, %v1272
  %1466 = vst.msk [vmem:[%s3 + $0xc4] sm:$0xf] %vm1416, %v1273
  %1467 = vst.msk [vmem:[%s3 + $0xc8] sm:$0xf] %vm1416, %v1274
  %1468 = vst.msk [vmem:[%s3 + $0xcc] sm:$0xf] %vm1416, %v1275
  %1469 = vst.msk [vmem:[%s3 + $0xd0] sm:$0xf] %vm1416, %v1276
  %1470 = vst.msk [vmem:[%s3 + $0xd4] sm:$0xf] %vm1416, %v1277
  %1471 = vst.msk [vmem:[%s3 + $0xd8] sm:$0xf] %vm1416, %v1278
  %1472 = vst.msk [vmem:[%s3 + $0xdc] sm:$0xf] %vm1416, %v1279
  %1473 = vst.msk [vmem:[%s3 + $0xe0] sm:$0xf] %vm1416, %v1280
  %1474 = vst.msk [vmem:[%s3 + $0xe4] sm:$0xf] %vm1416, %v1281
  %1475 = vst.msk [vmem:[%s3 + $0xe8] sm:$0xf] %vm1416, %v1282
  %1476 = vst.msk [vmem:[%s3 + $0xec] sm:$0xf] %vm1416, %v1283
  %1477 = vst.msk [vmem:[%s3 + $0xf0] sm:$0xf] %vm1416, %v1284
  %1478 = vst.msk [vmem:[%s3 + $0xf4] sm:$0xf] %vm1416, %v1285
  %1479 = vst.msk [vmem:[%s3 + $0xf8] sm:$0xf] %vm1416, %v1286
  %1480 = vst.msk [vmem:[%s3 + $0xfc] sm:$0xf] %vm1416, %v1287
  %1481 = vst.msk [vmem:[%s3 + $0x100] sm:$0xf] %vm1416, %v1288
  %1482 = vst.msk [vmem:[%s3 + $0x104] sm:$0xf] %vm1416, %v1289
  %1483 = vst.msk [vmem:[%s3 + $0x108] sm:$0xf] %vm1416, %v1290
  %1484 = vst.msk [vmem:[%s3 + $0x10c] sm:$0xf] %vm1416, %v1291
  %1485 = vst.msk [vmem:[%s3 + $0x110] sm:$0xf] %vm1416, %v1292
  %1486 = vst.msk [vmem:[%s3 + $0x114] sm:$0xf] %vm1416, %v1293
  %1487 = vst.msk [vmem:[%s3 + $0x118] sm:$0xf] %vm1416, %v1294
  %1488 = vst.msk [vmem:[%s3 + $0x11c] sm:$0xf] %vm1416, %v1295
  %1489 = vst.msk [vmem:[%s3 + $0x120] sm:$0xf] %vm1416, %v1296
  %1490 = vst.msk [vmem:[%s3 + $0x124] sm:$0xf] %vm1416, %v1297
  %1491 = vst.msk [vmem:[%s3 + $0x128] sm:$0xf] %vm1416, %v1298
  %1492 = vst.msk [vmem:[%s3 + $0x12c] sm:$0xf] %vm1416, %v1299
  %1493 = vst.msk [vmem:[%s3 + $0x130] sm:$0xf] %vm1416, %v1300
  %1494 = vst.msk [vmem:[%s3 + $0x134] sm:$0xf] %vm1416, %v1301
  %1495 = vst.msk [vmem:[%s3 + $0x138] sm:$0xf] %vm1416, %v1302
  %1496 = vst.msk [vmem:[%s3 + $0x13c] sm:$0xf] %vm1416, %v1303
  %1497 = vst.msk [vmem:[%s3 + $0x140] sm:$0xf] %vm1416, %v1304
  %1498 = vst.msk [vmem:[%s3 + $0x144] sm:$0xf] %vm1416, %v1305
  %1499 = vst.msk [vmem:[%s3 + $0x148] sm:$0xf] %vm1416, %v1306
  %1500 = vst.msk [vmem:[%s3 + $0x14c] sm:$0xf] %vm1416, %v1307
  %1501 = vst.msk [vmem:[%s3 + $0x150] sm:$0xf] %vm1416, %v1308
  %1502 = vst.msk [vmem:[%s3 + $0x154] sm:$0xf] %vm1416, %v1309
  %1503 = vst.msk [vmem:[%s3 + $0x158] sm:$0xf] %vm1416, %v1310
  %1504 = vst.msk [vmem:[%s3 + $0x15c] sm:$0xf] %vm1416, %v1311
  %1505 = vst.msk [vmem:[%s3 + $0x160] sm:$0xf] %vm1416, %v1312
  %1506 = vst.msk [vmem:[%s3 + $0x164] sm:$0xf] %vm1416, %v1313
  %1507 = vst.msk [vmem:[%s3 + $0x168] sm:$0xf] %vm1416, %v1314
  %1508 = vst.msk [vmem:[%s3 + $0x16c] sm:$0xf] %vm1416, %v1315
  %1509 = vst.msk [vmem:[%s3 + $0x170] sm:$0xf] %vm1416, %v1316
  %1510 = vst.msk [vmem:[%s3 + $0x174] sm:$0xf] %vm1416, %v1317
  %1511 = vst.msk [vmem:[%s3 + $0x178] sm:$0xf] %vm1416, %v1318
  %1512 = vst.msk [vmem:[%s3 + $0x17c] sm:$0xf] %vm1416, %v1319
  // Predicated region
  $region14: #{tpu_custom_call.1} parent=0 // pred_check
    _
  $region15: #{tpu_custom_call.1} parent=0 // pred_check_branch
    %1514 = sbr.rel (0) target = $region17
  $region16: #{tpu_custom_call.1} parent=0 // pred_region
    _
  $region17: #{tpu_custom_call.1} parent=0 // pred_fallthru
    _
  // Predicated region
  $region18: #{tpu_custom_call.1} parent=0 // pred_check
    _
  $region19: #{tpu_custom_call.1} parent=0 // pred_check_branch
    %1516 = sbr.rel (0) target = $region21
  $region20: #{tpu_custom_call.1} parent=0 // pred_region
    _
  $region21: #{tpu_custom_call.1} parent=0 // pred_fallthru
    _

</llo_original>
